<compile_context>
chip_gen: v5e
topology: v5e:2x2
jax: 0.10.0
libtpu: 0.0.40
codegen_flags: <defaults>
</compile_context>

<pallas_src>
import jax
import jax.numpy as jnp
from jax.experimental import pallas as pl
from jax.experimental.pallas import tpu as pltpu

C_OUT = 16                    # conv1 output channels
KSIZE = 3                     # conv1 kernel size
L_IN = 162                    # input length implied by Linear(16 * 81, 8) + MaxPool(2)
L_POOL = L_IN // 2            # 81 pooled positions per channel
N_OUT = 8                     # fc1 output features
LANE = 128                    # TPU lane width
CBLK = C_OUT * LANE           # 2048: channel-blocked feature width (col = c*128 + j)
OUT_PAD = LANE                # lane-dense padded output width


def _round_up(n, m):
    return ((n + m - 1) // m) * m


def _audio_cnn_kernel(xeo_ref, cwb_ref, fw_ref, fb_ref, out_ref, pooled_ref):
    # xeo_ref    : (4, TB, 128) f32 VMEM  -- conv-tap phases xpad[2j], xpad[2j+1],
    #                                        xpad[2j+2], xpad[2j+3] (lanes >= 81 zero)
    # cwb_ref    : (4, 16)      f32 SMEM  -- rows: w0, w1, w2, bias (scalar per channel)
    # fw_ref     : (2048, 128)  f32 VMEM  -- fc weight, row c*128+j (j>=81 zero), cols>=8 zero
    # fb_ref     : (1, 128)     f32 VMEM  -- fc bias, lanes >= 8 zero
    # out_ref    : (TB, 128)    f32 VMEM  -- lane-dense output block (cols >= 8 zero)
    # pooled_ref : (TB, 2048)   f32 VMEM scratch -- channel-blocked pooled features
    e0 = xeo_ref[0]
    o0 = xeo_ref[1]
    e1 = xeo_ref[2]
    o1 = xeo_ref[3]

    # conv1d(k=3, pad=1) + ReLU + MaxPool1d(2), one 128-lane channel block at a
    # time: scalar(SMEM) * vector(VPU) ops, results stored straight into the
    # pooled scratch — no tiled copies, no (TB,2048) live temporaries.
    for c in range(C_OUT):
        w0 = cwb_ref[0, c]
        w1 = cwb_ref[1, c]
        w2 = cwb_ref[2, c]
        b = cwb_ref[3, c]
        even = e0 * w0 + o0 * w1 + e1 * w2 + b      # conv out at positions 2j
        odd = o0 * w0 + e1 * w1 + o1 * w2 + b       # conv out at positions 2j+1
        # ReLU + MaxPool(2): max/relu commute (monotone; bias added pre-ReLU).
        pooled_ref[:, c * LANE:(c + 1) * LANE] = jnp.maximum(
            jnp.maximum(even, odd), 0.0)

    # Single fused FC matmul over the channel-blocked features (one MXU push).
    out_ref[...] = (jnp.dot(pooled_ref[...], fw_ref[...],
                            preferred_element_type=jnp.float32)
                    + fb_ref[...])


def simple_audio_cnn2(x, conv_w, conv_b, fc_w, fc_b, *, batch_tile=256):
    """x: (B, 1, 162) float32 (PyTorch NCW). Returns (B, 8) float32."""
    B = x.shape[0]
    xs = x[:, 0, :].astype(jnp.float32)                     # (B, 162)

    # Tile selection: large tiles amortize per-step overhead, but cap at
    # ceil(B/2) (rounded to 8) so the grid has >= 2 steps when B > 8 and both
    # v7x TensorCores get work.  tb is always a multiple of 8.
    half = _round_up(-(-B // 2), 8)
    tb = max(8, min(_round_up(batch_tile, 8), half))
    bp = _round_up(B, tb)
    grid = (bp // tb,)

    xpad = jnp.pad(xs, ((0, bp - B), (1, 1)))               # (Bp, 164), conv padding=1
    # Four conv-tap phases, each (Bp, 81): xpad[2j], xpad[2j+1], xpad[2j+2], xpad[2j+3]
    phases = jnp.stack([xpad[:, 0:162:2],
                        xpad[:, 1:163:2],
                        xpad[:, 2:164:2],
                        xpad[:, 3:164:2]], axis=0)          # (4, Bp, 81)
    phases = jnp.pad(phases, ((0, 0), (0, 0), (0, LANE - L_POOL)))   # (4, Bp, 128)

    # Conv weights/bias as a tiny scalar table (goes to SMEM): rows w0/w1/w2/bias.
    cw = conv_w[:, 0, :].astype(jnp.float32)                # (16, 3)
    cwb = jnp.concatenate([cw.T, conv_b.astype(jnp.float32)[None, :]],
                          axis=0)                           # (4, 16)

    # FC weight: PyTorch flatten index c*81+j  ->  channel-blocked row c*128+j,
    # rows j>=81 zeroed, output columns padded to 128 for lane-dense stores.
    fw3 = fc_w.astype(jnp.float32).reshape(N_OUT, C_OUT, L_POOL).transpose(1, 2, 0)
    fw3 = jnp.pad(fw3, ((0, 0), (0, LANE - L_POOL), (0, 0)))          # (16, 128, 8)
    fwp = fw3.reshape(CBLK, N_OUT)                                    # (2048, 8)
    fwp = jnp.pad(fwp, ((0, 0), (0, OUT_PAD - N_OUT)))                # (2048, 128)
    fbp = jnp.pad(fc_b.astype(jnp.float32).reshape(1, N_OUT),
                  ((0, 0), (0, OUT_PAD - N_OUT)))                     # (1, 128)

    out = pl.pallas_call(
        _audio_cnn_kernel,
        out_shape=jax.ShapeDtypeStruct((bp, OUT_PAD), jnp.float32),
        grid=grid,
        in_specs=[
            pl.BlockSpec((4, tb, LANE), lambda i: (0, i, 0)),         # phases (batch-tiled)
            pl.BlockSpec(memory_space=pltpu.MemorySpace.SMEM),        # conv scalars
            pl.BlockSpec((CBLK, OUT_PAD), lambda i: (0, 0)),          # fc weight (invariant)
            pl.BlockSpec((1, OUT_PAD), lambda i: (0, 0)),             # fc bias (invariant)
        ],
        out_specs=pl.BlockSpec((tb, OUT_PAD), lambda i: (i, 0)),
        scratch_shapes=[pltpu.VMEM((tb, CBLK), jnp.float32)],         # pooled features
        compiler_params=pltpu.CompilerParams(
            dimension_semantics=("parallel",)),                       # batch tiles across TCs
    )(phases, cwb, fwp, fbp)

    return out[:B, :N_OUT]


def _reference(x, conv_w, conv_b, fc_w, fc_b):
    # Pure-JAX reference mirroring the PyTorch forward (for correctness check).
    B = x.shape[0]
    xs = x[:, 0, :]
    xpad = jnp.pad(xs, ((0, 0), (1, 1)))
    w = conv_w[:, 0, :]                                           # (16, 3)
    conv = (w[None, :, 0, None] * xpad[:, None, 0:L_IN]
            + w[None, :, 1, None] * xpad[:, None, 1:L_IN + 1]
            + w[None, :, 2, None] * xpad[:, None, 2:L_IN + 2]
            + conv_b[None, :, None])                              # (B, 16, 162)
    relu = jnp.maximum(conv, 0.0)
    pooled = jnp.max(relu.reshape(B, C_OUT, L_POOL, 2), axis=-1)  # (B, 16, 81)
    flat = pooled.reshape(B, C_OUT * L_POOL)                      # (B, 1296)
    return flat @ fc_w.T + fc_b[None, :]


if __name__ == "__main__":
    key = jax.random.PRNGKey(0)
    k_x, k_cw, k_cb, k_fw, k_fb = jax.random.split(key, 5)

    B = 2
    x = jax.random.normal(k_x, (B, 1, L_IN), dtype=jnp.float32)

    # Deterministic synthetic parameters (PyTorch-like uniform fan-in bounds).
    conv_bound = 1.0 / (1 * KSIZE) ** 0.5
    fc_bound = 1.0 / (C_OUT * L_POOL) ** 0.5
    conv_w = jax.random.uniform(k_cw, (C_OUT, 1, KSIZE), jnp.float32,
                                -conv_bound, conv_bound)
    conv_b = jax.random.uniform(k_cb, (C_OUT,), jnp.float32,
                                -conv_bound, conv_bound)
    fc_w = jax.random.uniform(k_fw, (N_OUT, C_OUT * L_POOL), jnp.float32,
                              -fc_bound, fc_bound)
    fc_b = jax.random.uniform(k_fb, (N_OUT,), jnp.float32, -fc_bound, fc_bound)

    out = simple_audio_cnn2(x, conv_w, conv_b, fc_w, fc_b)
    out = jax.block_until_ready(out)

    ref = _reference(x, conv_w, conv_b, fc_w, fc_b)
    assert out.shape == (B, N_OUT)
    assert jnp.allclose(out, ref, atol=1e-3, rtol=1e-3), "mismatch vs reference"

    print("KERNEL_OK")
</pallas_src>

<mosaic_0001>
module attributes {stable_mosaic.version = 11 : i64} {
  func.func @_audio_cnn_kernel(%arg0: i32, %arg1: memref<4x8x128xf32, #tpu.memory_space<vmem>>, %arg2: memref<4x16xf32, #tpu.memory_space<smem>>, %arg3: memref<2048x128xf32, #tpu.memory_space<vmem>>, %arg4: memref<1x128xf32, #tpu.memory_space<vmem>>, %arg5: memref<8x128xf32, #tpu.memory_space<vmem>>, %arg6: memref<8x2048xf32, #tpu.memory_space<vmem>>) attributes {dimension_semantics = [#tpu.dimension_semantics<parallel>], iteration_bounds = array<i64: 1>, scalar_prefetch = 0 : i64, scratch_operands = 1 : i64, tpu.core_type = #tpu.core_type<tc>, window_params = [{transform_indices = @transform_0, window_bounds = array<i64: 4, 8, 128>}, {transform_indices = @transform_1, window_bounds = array<i64: 4, 16>}, {pipeline_mode = #tpu.pipeline_mode<synchronous>, transform_indices = @transform_2, window_bounds = array<i64: 2048, 128>}, {pipeline_mode = #tpu.pipeline_mode<synchronous>, transform_indices = @transform_3, window_bounds = array<i64: 1, 128>}, {transform_indices = @transform_4, window_bounds = array<i64: 8, 128>}]} {
    %c0 = arith.constant 0 : index
    %c0_0 = arith.constant 0 : index
    %c0_1 = arith.constant 0 : index
    %0 = vector.load %arg1[%c0, %c0_0, %c0_1] : memref<4x8x128xf32, #tpu.memory_space<vmem>>, vector<1x8x128xf32>
    %1 = vector.shape_cast %0 : vector<1x8x128xf32> to vector<8x128xf32>
    %c1 = arith.constant 1 : index
    %c0_2 = arith.constant 0 : index
    %c0_3 = arith.constant 0 : index
    %2 = vector.load %arg1[%c1, %c0_2, %c0_3] : memref<4x8x128xf32, #tpu.memory_space<vmem>>, vector<1x8x128xf32>
    %3 = vector.shape_cast %2 : vector<1x8x128xf32> to vector<8x128xf32>
    %c2 = arith.constant 2 : index
    %c0_4 = arith.constant 0 : index
    %c0_5 = arith.constant 0 : index
    %4 = vector.load %arg1[%c2, %c0_4, %c0_5] : memref<4x8x128xf32, #tpu.memory_space<vmem>>, vector<1x8x128xf32>
    %5 = vector.shape_cast %4 : vector<1x8x128xf32> to vector<8x128xf32>
    %c3 = arith.constant 3 : index
    %c0_6 = arith.constant 0 : index
    %c0_7 = arith.constant 0 : index
    %6 = vector.load %arg1[%c3, %c0_6, %c0_7] : memref<4x8x128xf32, #tpu.memory_space<vmem>>, vector<1x8x128xf32>
    %7 = vector.shape_cast %6 : vector<1x8x128xf32> to vector<8x128xf32>
    %c0_8 = arith.constant 0 : index
    %c0_9 = arith.constant 0 : index
    %8 = memref.load %arg2[%c0_8, %c0_9] : memref<4x16xf32, #tpu.memory_space<smem>>
    %c1_10 = arith.constant 1 : index
    %c0_11 = arith.constant 0 : index
    %9 = memref.load %arg2[%c1_10, %c0_11] : memref<4x16xf32, #tpu.memory_space<smem>>
    %c2_12 = arith.constant 2 : index
    %c0_13 = arith.constant 0 : index
    %10 = memref.load %arg2[%c2_12, %c0_13] : memref<4x16xf32, #tpu.memory_space<smem>>
    %c3_14 = arith.constant 3 : index
    %c0_15 = arith.constant 0 : index
    %11 = memref.load %arg2[%c3_14, %c0_15] : memref<4x16xf32, #tpu.memory_space<smem>>
    %12 = vector.broadcast %8 : f32 to vector<8x128xf32>
    %13 = arith.mulf %1, %12 : vector<8x128xf32>
    %14 = vector.broadcast %9 : f32 to vector<8x128xf32>
    %15 = arith.mulf %3, %14 : vector<8x128xf32>
    %16 = arith.addf %13, %15 : vector<8x128xf32>
    %17 = vector.broadcast %10 : f32 to vector<8x128xf32>
    %18 = arith.mulf %5, %17 : vector<8x128xf32>
    %19 = arith.addf %16, %18 : vector<8x128xf32>
    %20 = vector.broadcast %11 : f32 to vector<8x128xf32>
    %21 = arith.addf %19, %20 : vector<8x128xf32>
    %22 = vector.broadcast %8 : f32 to vector<8x128xf32>
    %23 = arith.mulf %3, %22 : vector<8x128xf32>
    %24 = vector.broadcast %9 : f32 to vector<8x128xf32>
    %25 = arith.mulf %5, %24 : vector<8x128xf32>
    %26 = arith.addf %23, %25 : vector<8x128xf32>
    %27 = vector.broadcast %10 : f32 to vector<8x128xf32>
    %28 = arith.mulf %7, %27 : vector<8x128xf32>
    %29 = arith.addf %26, %28 : vector<8x128xf32>
    %30 = vector.broadcast %11 : f32 to vector<8x128xf32>
    %31 = arith.addf %29, %30 : vector<8x128xf32>
    %32 = arith.maximumf %21, %31 : vector<8x128xf32>
    %cst = arith.constant 0.000000e+00 : f32
    %33 = vector.broadcast %cst : f32 to vector<8x128xf32>
    %34 = arith.maximumf %32, %33 : vector<8x128xf32>
    %c0_16 = arith.constant 0 : index
    %c0_17 = arith.constant 0 : index
    %35 = vector.load %arg6[%c0_16, %c0_17] : memref<8x2048xf32, #tpu.memory_space<vmem>>, vector<8x128xf32>
    tpu.vector_store %arg6[%c0_16, %c0_17], %34 {strides = array<i32>} : memref<8x2048xf32, #tpu.memory_space<vmem>>, vector<8x128xf32>,
    %c0_18 = arith.constant 0 : index
    %c1_19 = arith.constant 1 : index
    %36 = memref.load %arg2[%c0_18, %c1_19] : memref<4x16xf32, #tpu.memory_space<smem>>
    %c1_20 = arith.constant 1 : index
    %c1_21 = arith.constant 1 : index
    %37 = memref.load %arg2[%c1_20, %c1_21] : memref<4x16xf32, #tpu.memory_space<smem>>
    %c2_22 = arith.constant 2 : index
    %c1_23 = arith.constant 1 : index
    %38 = memref.load %arg2[%c2_22, %c1_23] : memref<4x16xf32, #tpu.memory_space<smem>>
    %c3_24 = arith.constant 3 : index
    %c1_25 = arith.constant 1 : index
    %39 = memref.load %arg2[%c3_24, %c1_25] : memref<4x16xf32, #tpu.memory_space<smem>>
    %40 = vector.broadcast %36 : f32 to vector<8x128xf32>
    %41 = arith.mulf %1, %40 : vector<8x128xf32>
    %42 = vector.broadcast %37 : f32 to vector<8x128xf32>
    %43 = arith.mulf %3, %42 : vector<8x128xf32>
    %44 = arith.addf %41, %43 : vector<8x128xf32>
    %45 = vector.broadcast %38 : f32 to vector<8x128xf32>
    %46 = arith.mulf %5, %45 : vector<8x128xf32>
    %47 = arith.addf %44, %46 : vector<8x128xf32>
    %48 = vector.broadcast %39 : f32 to vector<8x128xf32>
    %49 = arith.addf %47, %48 : vector<8x128xf32>
    %50 = vector.broadcast %36 : f32 to vector<8x128xf32>
    %51 = arith.mulf %3, %50 : vector<8x128xf32>
    %52 = vector.broadcast %37 : f32 to vector<8x128xf32>
    %53 = arith.mulf %5, %52 : vector<8x128xf32>
    %54 = arith.addf %51, %53 : vector<8x128xf32>
    %55 = vector.broadcast %38 : f32 to vector<8x128xf32>
    %56 = arith.mulf %7, %55 : vector<8x128xf32>
    %57 = arith.addf %54, %56 : vector<8x128xf32>
    %58 = vector.broadcast %39 : f32 to vector<8x128xf32>
    %59 = arith.addf %57, %58 : vector<8x128xf32>
    %60 = arith.maximumf %49, %59 : vector<8x128xf32>
    %cst_26 = arith.constant 0.000000e+00 : f32
    %61 = vector.broadcast %cst_26 : f32 to vector<8x128xf32>
    %62 = arith.maximumf %60, %61 : vector<8x128xf32>
    %c0_27 = arith.constant 0 : index
    %c128 = arith.constant 128 : index
    %63 = vector.load %arg6[%c0_27, %c128] : memref<8x2048xf32, #tpu.memory_space<vmem>>, vector<8x128xf32>
    tpu.vector_store %arg6[%c0_27, %c128], %62 {strides = array<i32>} : memref<8x2048xf32, #tpu.memory_space<vmem>>, vector<8x128xf32>,
    %c0_28 = arith.constant 0 : index
    %c2_29 = arith.constant 2 : index
    %64 = memref.load %arg2[%c0_28, %c2_29] : memref<4x16xf32, #tpu.memory_space<smem>>
    %c1_30 = arith.constant 1 : index
    %c2_31 = arith.constant 2 : index
    %65 = memref.load %arg2[%c1_30, %c2_31] : memref<4x16xf32, #tpu.memory_space<smem>>
    %c2_32 = arith.constant 2 : index
    %c2_33 = arith.constant 2 : index
    %66 = memref.load %arg2[%c2_32, %c2_33] : memref<4x16xf32, #tpu.memory_space<smem>>
    %c3_34 = arith.constant 3 : index
    %c2_35 = arith.constant 2 : index
    %67 = memref.load %arg2[%c3_34, %c2_35] : memref<4x16xf32, #tpu.memory_space<smem>>
    %68 = vector.broadcast %64 : f32 to vector<8x128xf32>
    %69 = arith.mulf %1, %68 : vector<8x128xf32>
    %70 = vector.broadcast %65 : f32 to vector<8x128xf32>
    %71 = arith.mulf %3, %70 : vector<8x128xf32>
    %72 = arith.addf %69, %71 : vector<8x128xf32>
    %73 = vector.broadcast %66 : f32 to vector<8x128xf32>
    %74 = arith.mulf %5, %73 : vector<8x128xf32>
    %75 = arith.addf %72, %74 : vector<8x128xf32>
    %76 = vector.broadcast %67 : f32 to vector<8x128xf32>
    %77 = arith.addf %75, %76 : vector<8x128xf32>
    %78 = vector.broadcast %64 : f32 to vector<8x128xf32>
    %79 = arith.mulf %3, %78 : vector<8x128xf32>
    %80 = vector.broadcast %65 : f32 to vector<8x128xf32>
    %81 = arith.mulf %5, %80 : vector<8x128xf32>
    %82 = arith.addf %79, %81 : vector<8x128xf32>
    %83 = vector.broadcast %66 : f32 to vector<8x128xf32>
    %84 = arith.mulf %7, %83 : vector<8x128xf32>
    %85 = arith.addf %82, %84 : vector<8x128xf32>
    %86 = vector.broadcast %67 : f32 to vector<8x128xf32>
    %87 = arith.addf %85, %86 : vector<8x128xf32>
    %88 = arith.maximumf %77, %87 : vector<8x128xf32>
    %cst_36 = arith.constant 0.000000e+00 : f32
    %89 = vector.broadcast %cst_36 : f32 to vector<8x128xf32>
    %90 = arith.maximumf %88, %89 : vector<8x128xf32>
    %c0_37 = arith.constant 0 : index
    %c256 = arith.constant 256 : index
    %91 = vector.load %arg6[%c0_37, %c256] : memref<8x2048xf32, #tpu.memory_space<vmem>>, vector<8x128xf32>
    tpu.vector_store %arg6[%c0_37, %c256], %90 {strides = array<i32>} : memref<8x2048xf32, #tpu.memory_space<vmem>>, vector<8x128xf32>,
    %c0_38 = arith.constant 0 : index
    %c3_39 = arith.constant 3 : index
    %92 = memref.load %arg2[%c0_38, %c3_39] : memref<4x16xf32, #tpu.memory_space<smem>>
    %c1_40 = arith.constant 1 : index
    %c3_41 = arith.constant 3 : index
    %93 = memref.load %arg2[%c1_40, %c3_41] : memref<4x16xf32, #tpu.memory_space<smem>>
    %c2_42 = arith.constant 2 : index
    %c3_43 = arith.constant 3 : index
    %94 = memref.load %arg2[%c2_42, %c3_43] : memref<4x16xf32, #tpu.memory_space<smem>>
    %c3_44 = arith.constant 3 : index
    %c3_45 = arith.constant 3 : index
    %95 = memref.load %arg2[%c3_44, %c3_45] : memref<4x16xf32, #tpu.memory_space<smem>>
    %96 = vector.broadcast %92 : f32 to vector<8x128xf32>
    %97 = arith.mulf %1, %96 : vector<8x128xf32>
    %98 = vector.broadcast %93 : f32 to vector<8x128xf32>
    %99 = arith.mulf %3, %98 : vector<8x128xf32>
    %100 = arith.addf %97, %99 : vector<8x128xf32>
    %101 = vector.broadcast %94 : f32 to vector<8x128xf32>
    %102 = arith.mulf %5, %101 : vector<8x128xf32>
    %103 = arith.addf %100, %102 : vector<8x128xf32>
    %104 = vector.broadcast %95 : f32 to vector<8x128xf32>
    %105 = arith.addf %103, %104 : vector<8x128xf32>
    %106 = vector.broadcast %92 : f32 to vector<8x128xf32>
    %107 = arith.mulf %3, %106 : vector<8x128xf32>
    %108 = vector.broadcast %93 : f32 to vector<8x128xf32>
    %109 = arith.mulf %5, %108 : vector<8x128xf32>
    %110 = arith.addf %107, %109 : vector<8x128xf32>
    %111 = vector.broadcast %94 : f32 to vector<8x128xf32>
    %112 = arith.mulf %7, %111 : vector<8x128xf32>
    %113 = arith.addf %110, %112 : vector<8x128xf32>
    %114 = vector.broadcast %95 : f32 to vector<8x128xf32>
    %115 = arith.addf %113, %114 : vector<8x128xf32>
    %116 = arith.maximumf %105, %115 : vector<8x128xf32>
    %cst_46 = arith.constant 0.000000e+00 : f32
    %117 = vector.broadcast %cst_46 : f32 to vector<8x128xf32>
    %118 = arith.maximumf %116, %117 : vector<8x128xf32>
    %c0_47 = arith.constant 0 : index
    %c384 = arith.constant 384 : index
    %119 = vector.load %arg6[%c0_47, %c384] : memref<8x2048xf32, #tpu.memory_space<vmem>>, vector<8x128xf32>
    tpu.vector_store %arg6[%c0_47, %c384], %118 {strides = array<i32>} : memref<8x2048xf32, #tpu.memory_space<vmem>>, vector<8x128xf32>,
    %c0_48 = arith.constant 0 : index
    %c4 = arith.constant 4 : index
    %120 = memref.load %arg2[%c0_48, %c4] : memref<4x16xf32, #tpu.memory_space<smem>>
    %c1_49 = arith.constant 1 : index
    %c4_50 = arith.constant 4 : index
    %121 = memref.load %arg2[%c1_49, %c4_50] : memref<4x16xf32, #tpu.memory_space<smem>>
    %c2_51 = arith.constant 2 : index
    %c4_52 = arith.constant 4 : index
    %122 = memref.load %arg2[%c2_51, %c4_52] : memref<4x16xf32, #tpu.memory_space<smem>>
    %c3_53 = arith.constant 3 : index
    %c4_54 = arith.constant 4 : index
    %123 = memref.load %arg2[%c3_53, %c4_54] : memref<4x16xf32, #tpu.memory_space<smem>>
    %124 = vector.broadcast %120 : f32 to vector<8x128xf32>
    %125 = arith.mulf %1, %124 : vector<8x128xf32>
    %126 = vector.broadcast %121 : f32 to vector<8x128xf32>
    %127 = arith.mulf %3, %126 : vector<8x128xf32>
    %128 = arith.addf %125, %127 : vector<8x128xf32>
    %129 = vector.broadcast %122 : f32 to vector<8x128xf32>
    %130 = arith.mulf %5, %129 : vector<8x128xf32>
    %131 = arith.addf %128, %130 : vector<8x128xf32>
    %132 = vector.broadcast %123 : f32 to vector<8x128xf32>
    %133 = arith.addf %131, %132 : vector<8x128xf32>
    %134 = vector.broadcast %120 : f32 to vector<8x128xf32>
    %135 = arith.mulf %3, %134 : vector<8x128xf32>
    %136 = vector.broadcast %121 : f32 to vector<8x128xf32>
    %137 = arith.mulf %5, %136 : vector<8x128xf32>
    %138 = arith.addf %135, %137 : vector<8x128xf32>
    %139 = vector.broadcast %122 : f32 to vector<8x128xf32>
    %140 = arith.mulf %7, %139 : vector<8x128xf32>
    %141 = arith.addf %138, %140 : vector<8x128xf32>
    %142 = vector.broadcast %123 : f32 to vector<8x128xf32>
    %143 = arith.addf %141, %142 : vector<8x128xf32>
    %144 = arith.maximumf %133, %143 : vector<8x128xf32>
    %cst_55 = arith.constant 0.000000e+00 : f32
    %145 = vector.broadcast %cst_55 : f32 to vector<8x128xf32>
    %146 = arith.maximumf %144, %145 : vector<8x128xf32>
    %c0_56 = arith.constant 0 : index
    %c512 = arith.constant 512 : index
    %147 = vector.load %arg6[%c0_56, %c512] : memref<8x2048xf32, #tpu.memory_space<vmem>>, vector<8x128xf32>
    tpu.vector_store %arg6[%c0_56, %c512], %146 {strides = array<i32>} : memref<8x2048xf32, #tpu.memory_space<vmem>>, vector<8x128xf32>,
    %c0_57 = arith.constant 0 : index
    %c5 = arith.constant 5 : index
    %148 = memref.load %arg2[%c0_57, %c5] : memref<4x16xf32, #tpu.memory_space<smem>>
    %c1_58 = arith.constant 1 : index
    %c5_59 = arith.constant 5 : index
    %149 = memref.load %arg2[%c1_58, %c5_59] : memref<4x16xf32, #tpu.memory_space<smem>>
    %c2_60 = arith.constant 2 : index
    %c5_61 = arith.constant 5 : index
    %150 = memref.load %arg2[%c2_60, %c5_61] : memref<4x16xf32, #tpu.memory_space<smem>>
    %c3_62 = arith.constant 3 : index
    %c5_63 = arith.constant 5 : index
    %151 = memref.load %arg2[%c3_62, %c5_63] : memref<4x16xf32, #tpu.memory_space<smem>>
    %152 = vector.broadcast %148 : f32 to vector<8x128xf32>
    %153 = arith.mulf %1, %152 : vector<8x128xf32>
    %154 = vector.broadcast %149 : f32 to vector<8x128xf32>
    %155 = arith.mulf %3, %154 : vector<8x128xf32>
    %156 = arith.addf %153, %155 : vector<8x128xf32>
    %157 = vector.broadcast %150 : f32 to vector<8x128xf32>
    %158 = arith.mulf %5, %157 : vector<8x128xf32>
    %159 = arith.addf %156, %158 : vector<8x128xf32>
    %160 = vector.broadcast %151 : f32 to vector<8x128xf32>
    %161 = arith.addf %159, %160 : vector<8x128xf32>
    %162 = vector.broadcast %148 : f32 to vector<8x128xf32>
    %163 = arith.mulf %3, %162 : vector<8x128xf32>
    %164 = vector.broadcast %149 : f32 to vector<8x128xf32>
    %165 = arith.mulf %5, %164 : vector<8x128xf32>
    %166 = arith.addf %163, %165 : vector<8x128xf32>
    %167 = vector.broadcast %150 : f32 to vector<8x128xf32>
    %168 = arith.mulf %7, %167 : vector<8x128xf32>
    %169 = arith.addf %166, %168 : vector<8x128xf32>
    %170 = vector.broadcast %151 : f32 to vector<8x128xf32>
    %171 = arith.addf %169, %170 : vector<8x128xf32>
    %172 = arith.maximumf %161, %171 : vector<8x128xf32>
    %cst_64 = arith.constant 0.000000e+00 : f32
    %173 = vector.broadcast %cst_64 : f32 to vector<8x128xf32>
    %174 = arith.maximumf %172, %173 : vector<8x128xf32>
    %c0_65 = arith.constant 0 : index
    %c640 = arith.constant 640 : index
    %175 = vector.load %arg6[%c0_65, %c640] : memref<8x2048xf32, #tpu.memory_space<vmem>>, vector<8x128xf32>
    tpu.vector_store %arg6[%c0_65, %c640], %174 {strides = array<i32>} : memref<8x2048xf32, #tpu.memory_space<vmem>>, vector<8x128xf32>,
    %c0_66 = arith.constant 0 : index
    %c6 = arith.constant 6 : index
    %176 = memref.load %arg2[%c0_66, %c6] : memref<4x16xf32, #tpu.memory_space<smem>>
    %c1_67 = arith.constant 1 : index
    %c6_68 = arith.constant 6 : index
    %177 = memref.load %arg2[%c1_67, %c6_68] : memref<4x16xf32, #tpu.memory_space<smem>>
    %c2_69 = arith.constant 2 : index
    %c6_70 = arith.constant 6 : index
    %178 = memref.load %arg2[%c2_69, %c6_70] : memref<4x16xf32, #tpu.memory_space<smem>>
    %c3_71 = arith.constant 3 : index
    %c6_72 = arith.constant 6 : index
    %179 = memref.load %arg2[%c3_71, %c6_72] : memref<4x16xf32, #tpu.memory_space<smem>>
    %180 = vector.broadcast %176 : f32 to vector<8x128xf32>
    %181 = arith.mulf %1, %180 : vector<8x128xf32>
    %182 = vector.broadcast %177 : f32 to vector<8x128xf32>
    %183 = arith.mulf %3, %182 : vector<8x128xf32>
    %184 = arith.addf %181, %183 : vector<8x128xf32>
    %185 = vector.broadcast %178 : f32 to vector<8x128xf32>
    %186 = arith.mulf %5, %185 : vector<8x128xf32>
    %187 = arith.addf %184, %186 : vector<8x128xf32>
    %188 = vector.broadcast %179 : f32 to vector<8x128xf32>
    %189 = arith.addf %187, %188 : vector<8x128xf32>
    %190 = vector.broadcast %176 : f32 to vector<8x128xf32>
    %191 = arith.mulf %3, %190 : vector<8x128xf32>
    %192 = vector.broadcast %177 : f32 to vector<8x128xf32>
    %193 = arith.mulf %5, %192 : vector<8x128xf32>
    %194 = arith.addf %191, %193 : vector<8x128xf32>
    %195 = vector.broadcast %178 : f32 to vector<8x128xf32>
    %196 = arith.mulf %7, %195 : vector<8x128xf32>
    %197 = arith.addf %194, %196 : vector<8x128xf32>
    %198 = vector.broadcast %179 : f32 to vector<8x128xf32>
    %199 = arith.addf %197, %198 : vector<8x128xf32>
    %200 = arith.maximumf %189, %199 : vector<8x128xf32>
    %cst_73 = arith.constant 0.000000e+00 : f32
    %201 = vector.broadcast %cst_73 : f32 to vector<8x128xf32>
    %202 = arith.maximumf %200, %201 : vector<8x128xf32>
    %c0_74 = arith.constant 0 : index
    %c768 = arith.constant 768 : index
    %203 = vector.load %arg6[%c0_74, %c768] : memref<8x2048xf32, #tpu.memory_space<vmem>>, vector<8x128xf32>
    tpu.vector_store %arg6[%c0_74, %c768], %202 {strides = array<i32>} : memref<8x2048xf32, #tpu.memory_space<vmem>>, vector<8x128xf32>,
    %c0_75 = arith.constant 0 : index
    %c7 = arith.constant 7 : index
    %204 = memref.load %arg2[%c0_75, %c7] : memref<4x16xf32, #tpu.memory_space<smem>>
    %c1_76 = arith.constant 1 : index
    %c7_77 = arith.constant 7 : index
    %205 = memref.load %arg2[%c1_76, %c7_77] : memref<4x16xf32, #tpu.memory_space<smem>>
    %c2_78 = arith.constant 2 : index
    %c7_79 = arith.constant 7 : index
    %206 = memref.load %arg2[%c2_78, %c7_79] : memref<4x16xf32, #tpu.memory_space<smem>>
    %c3_80 = arith.constant 3 : index
    %c7_81 = arith.constant 7 : index
    %207 = memref.load %arg2[%c3_80, %c7_81] : memref<4x16xf32, #tpu.memory_space<smem>>
    %208 = vector.broadcast %204 : f32 to vector<8x128xf32>
    %209 = arith.mulf %1, %208 : vector<8x128xf32>
    %210 = vector.broadcast %205 : f32 to vector<8x128xf32>
    %211 = arith.mulf %3, %210 : vector<8x128xf32>
    %212 = arith.addf %209, %211 : vector<8x128xf32>
    %213 = vector.broadcast %206 : f32 to vector<8x128xf32>
    %214 = arith.mulf %5, %213 : vector<8x128xf32>
    %215 = arith.addf %212, %214 : vector<8x128xf32>
    %216 = vector.broadcast %207 : f32 to vector<8x128xf32>
    %217 = arith.addf %215, %216 : vector<8x128xf32>
    %218 = vector.broadcast %204 : f32 to vector<8x128xf32>
    %219 = arith.mulf %3, %218 : vector<8x128xf32>
    %220 = vector.broadcast %205 : f32 to vector<8x128xf32>
    %221 = arith.mulf %5, %220 : vector<8x128xf32>
    %222 = arith.addf %219, %221 : vector<8x128xf32>
    %223 = vector.broadcast %206 : f32 to vector<8x128xf32>
    %224 = arith.mulf %7, %223 : vector<8x128xf32>
    %225 = arith.addf %222, %224 : vector<8x128xf32>
    %226 = vector.broadcast %207 : f32 to vector<8x128xf32>
    %227 = arith.addf %225, %226 : vector<8x128xf32>
    %228 = arith.maximumf %217, %227 : vector<8x128xf32>
    %cst_82 = arith.constant 0.000000e+00 : f32
    %229 = vector.broadcast %cst_82 : f32 to vector<8x128xf32>
    %230 = arith.maximumf %228, %229 : vector<8x128xf32>
    %c0_83 = arith.constant 0 : index
    %c896 = arith.constant 896 : index
    %231 = vector.load %arg6[%c0_83, %c896] : memref<8x2048xf32, #tpu.memory_space<vmem>>, vector<8x128xf32>
    tpu.vector_store %arg6[%c0_83, %c896], %230 {strides = array<i32>} : memref<8x2048xf32, #tpu.memory_space<vmem>>, vector<8x128xf32>,
    %c0_84 = arith.constant 0 : index
    %c8 = arith.constant 8 : index
    %232 = memref.load %arg2[%c0_84, %c8] : memref<4x16xf32, #tpu.memory_space<smem>>
    %c1_85 = arith.constant 1 : index
    %c8_86 = arith.constant 8 : index
    %233 = memref.load %arg2[%c1_85, %c8_86] : memref<4x16xf32, #tpu.memory_space<smem>>
    %c2_87 = arith.constant 2 : index
    %c8_88 = arith.constant 8 : index
    %234 = memref.load %arg2[%c2_87, %c8_88] : memref<4x16xf32, #tpu.memory_space<smem>>
    %c3_89 = arith.constant 3 : index
    %c8_90 = arith.constant 8 : index
    %235 = memref.load %arg2[%c3_89, %c8_90] : memref<4x16xf32, #tpu.memory_space<smem>>
    %236 = vector.broadcast %232 : f32 to vector<8x128xf32>
    %237 = arith.mulf %1, %236 : vector<8x128xf32>
    %238 = vector.broadcast %233 : f32 to vector<8x128xf32>
    %239 = arith.mulf %3, %238 : vector<8x128xf32>
    %240 = arith.addf %237, %239 : vector<8x128xf32>
    %241 = vector.broadcast %234 : f32 to vector<8x128xf32>
    %242 = arith.mulf %5, %241 : vector<8x128xf32>
    %243 = arith.addf %240, %242 : vector<8x128xf32>
    %244 = vector.broadcast %235 : f32 to vector<8x128xf32>
    %245 = arith.addf %243, %244 : vector<8x128xf32>
    %246 = vector.broadcast %232 : f32 to vector<8x128xf32>
    %247 = arith.mulf %3, %246 : vector<8x128xf32>
    %248 = vector.broadcast %233 : f32 to vector<8x128xf32>
    %249 = arith.mulf %5, %248 : vector<8x128xf32>
    %250 = arith.addf %247, %249 : vector<8x128xf32>
    %251 = vector.broadcast %234 : f32 to vector<8x128xf32>
    %252 = arith.mulf %7, %251 : vector<8x128xf32>
    %253 = arith.addf %250, %252 : vector<8x128xf32>
    %254 = vector.broadcast %235 : f32 to vector<8x128xf32>
    %255 = arith.addf %253, %254 : vector<8x128xf32>
    %256 = arith.maximumf %245, %255 : vector<8x128xf32>
    %cst_91 = arith.constant 0.000000e+00 : f32
    %257 = vector.broadcast %cst_91 : f32 to vector<8x128xf32>
    %258 = arith.maximumf %256, %257 : vector<8x128xf32>
    %c0_92 = arith.constant 0 : index
    %c1024 = arith.constant 1024 : index
    %259 = vector.load %arg6[%c0_92, %c1024] : memref<8x2048xf32, #tpu.memory_space<vmem>>, vector<8x128xf32>
    tpu.vector_store %arg6[%c0_92, %c1024], %258 {strides = array<i32>} : memref<8x2048xf32, #tpu.memory_space<vmem>>, vector<8x128xf32>,
    %c0_93 = arith.constant 0 : index
    %c9 = arith.constant 9 : index
    %260 = memref.load %arg2[%c0_93, %c9] : memref<4x16xf32, #tpu.memory_space<smem>>
    %c1_94 = arith.constant 1 : index
    %c9_95 = arith.constant 9 : index
    %261 = memref.load %arg2[%c1_94, %c9_95] : memref<4x16xf32, #tpu.memory_space<smem>>
    %c2_96 = arith.constant 2 : index
    %c9_97 = arith.constant 9 : index
    %262 = memref.load %arg2[%c2_96, %c9_97] : memref<4x16xf32, #tpu.memory_space<smem>>
    %c3_98 = arith.constant 3 : index
    %c9_99 = arith.constant 9 : index
    %263 = memref.load %arg2[%c3_98, %c9_99] : memref<4x16xf32, #tpu.memory_space<smem>>
    %264 = vector.broadcast %260 : f32 to vector<8x128xf32>
    %265 = arith.mulf %1, %264 : vector<8x128xf32>
    %266 = vector.broadcast %261 : f32 to vector<8x128xf32>
    %267 = arith.mulf %3, %266 : vector<8x128xf32>
    %268 = arith.addf %265, %267 : vector<8x128xf32>
    %269 = vector.broadcast %262 : f32 to vector<8x128xf32>
    %270 = arith.mulf %5, %269 : vector<8x128xf32>
    %271 = arith.addf %268, %270 : vector<8x128xf32>
    %272 = vector.broadcast %263 : f32 to vector<8x128xf32>
    %273 = arith.addf %271, %272 : vector<8x128xf32>
    %274 = vector.broadcast %260 : f32 to vector<8x128xf32>
    %275 = arith.mulf %3, %274 : vector<8x128xf32>
    %276 = vector.broadcast %261 : f32 to vector<8x128xf32>
    %277 = arith.mulf %5, %276 : vector<8x128xf32>
    %278 = arith.addf %275, %277 : vector<8x128xf32>
    %279 = vector.broadcast %262 : f32 to vector<8x128xf32>
    %280 = arith.mulf %7, %279 : vector<8x128xf32>
    %281 = arith.addf %278, %280 : vector<8x128xf32>
    %282 = vector.broadcast %263 : f32 to vector<8x128xf32>
    %283 = arith.addf %281, %282 : vector<8x128xf32>
    %284 = arith.maximumf %273, %283 : vector<8x128xf32>
    %cst_100 = arith.constant 0.000000e+00 : f32
    %285 = vector.broadcast %cst_100 : f32 to vector<8x128xf32>
    %286 = arith.maximumf %284, %285 : vector<8x128xf32>
    %c0_101 = arith.constant 0 : index
    %c1152 = arith.constant 1152 : index
    %287 = vector.load %arg6[%c0_101, %c1152] : memref<8x2048xf32, #tpu.memory_space<vmem>>, vector<8x128xf32>
    tpu.vector_store %arg6[%c0_101, %c1152], %286 {strides = array<i32>} : memref<8x2048xf32, #tpu.memory_space<vmem>>, vector<8x128xf32>,
    %c0_102 = arith.constant 0 : index
    %c10 = arith.constant 10 : index
    %288 = memref.load %arg2[%c0_102, %c10] : memref<4x16xf32, #tpu.memory_space<smem>>
    %c1_103 = arith.constant 1 : index
    %c10_104 = arith.constant 10 : index
    %289 = memref.load %arg2[%c1_103, %c10_104] : memref<4x16xf32, #tpu.memory_space<smem>>
    %c2_105 = arith.constant 2 : index
    %c10_106 = arith.constant 10 : index
    %290 = memref.load %arg2[%c2_105, %c10_106] : memref<4x16xf32, #tpu.memory_space<smem>>
    %c3_107 = arith.constant 3 : index
    %c10_108 = arith.constant 10 : index
    %291 = memref.load %arg2[%c3_107, %c10_108] : memref<4x16xf32, #tpu.memory_space<smem>>
    %292 = vector.broadcast %288 : f32 to vector<8x128xf32>
    %293 = arith.mulf %1, %292 : vector<8x128xf32>
    %294 = vector.broadcast %289 : f32 to vector<8x128xf32>
    %295 = arith.mulf %3, %294 : vector<8x128xf32>
    %296 = arith.addf %293, %295 : vector<8x128xf32>
    %297 = vector.broadcast %290 : f32 to vector<8x128xf32>
    %298 = arith.mulf %5, %297 : vector<8x128xf32>
    %299 = arith.addf %296, %298 : vector<8x128xf32>
    %300 = vector.broadcast %291 : f32 to vector<8x128xf32>
    %301 = arith.addf %299, %300 : vector<8x128xf32>
    %302 = vector.broadcast %288 : f32 to vector<8x128xf32>
    %303 = arith.mulf %3, %302 : vector<8x128xf32>
    %304 = vector.broadcast %289 : f32 to vector<8x128xf32>
    %305 = arith.mulf %5, %304 : vector<8x128xf32>
    %306 = arith.addf %303, %305 : vector<8x128xf32>
    %307 = vector.broadcast %290 : f32 to vector<8x128xf32>
    %308 = arith.mulf %7, %307 : vector<8x128xf32>
    %309 = arith.addf %306, %308 : vector<8x128xf32>
    %310 = vector.broadcast %291 : f32 to vector<8x128xf32>
    %311 = arith.addf %309, %310 : vector<8x128xf32>
    %312 = arith.maximumf %301, %311 : vector<8x128xf32>
    %cst_109 = arith.constant 0.000000e+00 : f32
    %313 = vector.broadcast %cst_109 : f32 to vector<8x128xf32>
    %314 = arith.maximumf %312, %313 : vector<8x128xf32>
    %c0_110 = arith.constant 0 : index
    %c1280 = arith.constant 1280 : index
    %315 = vector.load %arg6[%c0_110, %c1280] : memref<8x2048xf32, #tpu.memory_space<vmem>>, vector<8x128xf32>
    tpu.vector_store %arg6[%c0_110, %c1280], %314 {strides = array<i32>} : memref<8x2048xf32, #tpu.memory_space<vmem>>, vector<8x128xf32>,
    %c0_111 = arith.constant 0 : index
    %c11 = arith.constant 11 : index
    %316 = memref.load %arg2[%c0_111, %c11] : memref<4x16xf32, #tpu.memory_space<smem>>
    %c1_112 = arith.constant 1 : index
    %c11_113 = arith.constant 11 : index
    %317 = memref.load %arg2[%c1_112, %c11_113] : memref<4x16xf32, #tpu.memory_space<smem>>
    %c2_114 = arith.constant 2 : index
    %c11_115 = arith.constant 11 : index
    %318 = memref.load %arg2[%c2_114, %c11_115] : memref<4x16xf32, #tpu.memory_space<smem>>
    %c3_116 = arith.constant 3 : index
    %c11_117 = arith.constant 11 : index
    %319 = memref.load %arg2[%c3_116, %c11_117] : memref<4x16xf32, #tpu.memory_space<smem>>
    %320 = vector.broadcast %316 : f32 to vector<8x128xf32>
    %321 = arith.mulf %1, %320 : vector<8x128xf32>
    %322 = vector.broadcast %317 : f32 to vector<8x128xf32>
    %323 = arith.mulf %3, %322 : vector<8x128xf32>
    %324 = arith.addf %321, %323 : vector<8x128xf32>
    %325 = vector.broadcast %318 : f32 to vector<8x128xf32>
    %326 = arith.mulf %5, %325 : vector<8x128xf32>
    %327 = arith.addf %324, %326 : vector<8x128xf32>
    %328 = vector.broadcast %319 : f32 to vector<8x128xf32>
    %329 = arith.addf %327, %328 : vector<8x128xf32>
    %330 = vector.broadcast %316 : f32 to vector<8x128xf32>
    %331 = arith.mulf %3, %330 : vector<8x128xf32>
    %332 = vector.broadcast %317 : f32 to vector<8x128xf32>
    %333 = arith.mulf %5, %332 : vector<8x128xf32>
    %334 = arith.addf %331, %333 : vector<8x128xf32>
    %335 = vector.broadcast %318 : f32 to vector<8x128xf32>
    %336 = arith.mulf %7, %335 : vector<8x128xf32>
    %337 = arith.addf %334, %336 : vector<8x128xf32>
    %338 = vector.broadcast %319 : f32 to vector<8x128xf32>
    %339 = arith.addf %337, %338 : vector<8x128xf32>
    %340 = arith.maximumf %329, %339 : vector<8x128xf32>
    %cst_118 = arith.constant 0.000000e+00 : f32
    %341 = vector.broadcast %cst_118 : f32 to vector<8x128xf32>
    %342 = arith.maximumf %340, %341 : vector<8x128xf32>
    %c0_119 = arith.constant 0 : index
    %c1408 = arith.constant 1408 : index
    %343 = vector.load %arg6[%c0_119, %c1408] : memref<8x2048xf32, #tpu.memory_space<vmem>>, vector<8x128xf32>
    tpu.vector_store %arg6[%c0_119, %c1408], %342 {strides = array<i32>} : memref<8x2048xf32, #tpu.memory_space<vmem>>, vector<8x128xf32>,
    %c0_120 = arith.constant 0 : index
    %c12 = arith.constant 12 : index
    %344 = memref.load %arg2[%c0_120, %c12] : memref<4x16xf32, #tpu.memory_space<smem>>
    %c1_121 = arith.constant 1 : index
    %c12_122 = arith.constant 12 : index
    %345 = memref.load %arg2[%c1_121, %c12_122] : memref<4x16xf32, #tpu.memory_space<smem>>
    %c2_123 = arith.constant 2 : index
    %c12_124 = arith.constant 12 : index
    %346 = memref.load %arg2[%c2_123, %c12_124] : memref<4x16xf32, #tpu.memory_space<smem>>
    %c3_125 = arith.constant 3 : index
    %c12_126 = arith.constant 12 : index
    %347 = memref.load %arg2[%c3_125, %c12_126] : memref<4x16xf32, #tpu.memory_space<smem>>
    %348 = vector.broadcast %344 : f32 to vector<8x128xf32>
    %349 = arith.mulf %1, %348 : vector<8x128xf32>
    %350 = vector.broadcast %345 : f32 to vector<8x128xf32>
    %351 = arith.mulf %3, %350 : vector<8x128xf32>
    %352 = arith.addf %349, %351 : vector<8x128xf32>
    %353 = vector.broadcast %346 : f32 to vector<8x128xf32>
    %354 = arith.mulf %5, %353 : vector<8x128xf32>
    %355 = arith.addf %352, %354 : vector<8x128xf32>
    %356 = vector.broadcast %347 : f32 to vector<8x128xf32>
    %357 = arith.addf %355, %356 : vector<8x128xf32>
    %358 = vector.broadcast %344 : f32 to vector<8x128xf32>
    %359 = arith.mulf %3, %358 : vector<8x128xf32>
    %360 = vector.broadcast %345 : f32 to vector<8x128xf32>
    %361 = arith.mulf %5, %360 : vector<8x128xf32>
    %362 = arith.addf %359, %361 : vector<8x128xf32>
    %363 = vector.broadcast %346 : f32 to vector<8x128xf32>
    %364 = arith.mulf %7, %363 : vector<8x128xf32>
    %365 = arith.addf %362, %364 : vector<8x128xf32>
    %366 = vector.broadcast %347 : f32 to vector<8x128xf32>
    %367 = arith.addf %365, %366 : vector<8x128xf32>
    %368 = arith.maximumf %357, %367 : vector<8x128xf32>
    %cst_127 = arith.constant 0.000000e+00 : f32
    %369 = vector.broadcast %cst_127 : f32 to vector<8x128xf32>
    %370 = arith.maximumf %368, %369 : vector<8x128xf32>
    %c0_128 = arith.constant 0 : index
    %c1536 = arith.constant 1536 : index
    %371 = vector.load %arg6[%c0_128, %c1536] : memref<8x2048xf32, #tpu.memory_space<vmem>>, vector<8x128xf32>
    tpu.vector_store %arg6[%c0_128, %c1536], %370 {strides = array<i32>} : memref<8x2048xf32, #tpu.memory_space<vmem>>, vector<8x128xf32>,
    %c0_129 = arith.constant 0 : index
    %c13 = arith.constant 13 : index
    %372 = memref.load %arg2[%c0_129, %c13] : memref<4x16xf32, #tpu.memory_space<smem>>
    %c1_130 = arith.constant 1 : index
    %c13_131 = arith.constant 13 : index
    %373 = memref.load %arg2[%c1_130, %c13_131] : memref<4x16xf32, #tpu.memory_space<smem>>
    %c2_132 = arith.constant 2 : index
    %c13_133 = arith.constant 13 : index
    %374 = memref.load %arg2[%c2_132, %c13_133] : memref<4x16xf32, #tpu.memory_space<smem>>
    %c3_134 = arith.constant 3 : index
    %c13_135 = arith.constant 13 : index
    %375 = memref.load %arg2[%c3_134, %c13_135] : memref<4x16xf32, #tpu.memory_space<smem>>
    %376 = vector.broadcast %372 : f32 to vector<8x128xf32>
    %377 = arith.mulf %1, %376 : vector<8x128xf32>
    %378 = vector.broadcast %373 : f32 to vector<8x128xf32>
    %379 = arith.mulf %3, %378 : vector<8x128xf32>
    %380 = arith.addf %377, %379 : vector<8x128xf32>
    %381 = vector.broadcast %374 : f32 to vector<8x128xf32>
    %382 = arith.mulf %5, %381 : vector<8x128xf32>
    %383 = arith.addf %380, %382 : vector<8x128xf32>
    %384 = vector.broadcast %375 : f32 to vector<8x128xf32>
    %385 = arith.addf %383, %384 : vector<8x128xf32>
    %386 = vector.broadcast %372 : f32 to vector<8x128xf32>
    %387 = arith.mulf %3, %386 : vector<8x128xf32>
    %388 = vector.broadcast %373 : f32 to vector<8x128xf32>
    %389 = arith.mulf %5, %388 : vector<8x128xf32>
    %390 = arith.addf %387, %389 : vector<8x128xf32>
    %391 = vector.broadcast %374 : f32 to vector<8x128xf32>
    %392 = arith.mulf %7, %391 : vector<8x128xf32>
    %393 = arith.addf %390, %392 : vector<8x128xf32>
    %394 = vector.broadcast %375 : f32 to vector<8x128xf32>
    %395 = arith.addf %393, %394 : vector<8x128xf32>
    %396 = arith.maximumf %385, %395 : vector<8x128xf32>
    %cst_136 = arith.constant 0.000000e+00 : f32
    %397 = vector.broadcast %cst_136 : f32 to vector<8x128xf32>
    %398 = arith.maximumf %396, %397 : vector<8x128xf32>
    %c0_137 = arith.constant 0 : index
    %c1664 = arith.constant 1664 : index
    %399 = vector.load %arg6[%c0_137, %c1664] : memref<8x2048xf32, #tpu.memory_space<vmem>>, vector<8x128xf32>
    tpu.vector_store %arg6[%c0_137, %c1664], %398 {strides = array<i32>} : memref<8x2048xf32, #tpu.memory_space<vmem>>, vector<8x128xf32>,
    %c0_138 = arith.constant 0 : index
    %c14 = arith.constant 14 : index
    %400 = memref.load %arg2[%c0_138, %c14] : memref<4x16xf32, #tpu.memory_space<smem>>
    %c1_139 = arith.constant 1 : index
    %c14_140 = arith.constant 14 : index
    %401 = memref.load %arg2[%c1_139, %c14_140] : memref<4x16xf32, #tpu.memory_space<smem>>
    %c2_141 = arith.constant 2 : index
    %c14_142 = arith.constant 14 : index
    %402 = memref.load %arg2[%c2_141, %c14_142] : memref<4x16xf32, #tpu.memory_space<smem>>
    %c3_143 = arith.constant 3 : index
    %c14_144 = arith.constant 14 : index
    %403 = memref.load %arg2[%c3_143, %c14_144] : memref<4x16xf32, #tpu.memory_space<smem>>
    %404 = vector.broadcast %400 : f32 to vector<8x128xf32>
    %405 = arith.mulf %1, %404 : vector<8x128xf32>
    %406 = vector.broadcast %401 : f32 to vector<8x128xf32>
    %407 = arith.mulf %3, %406 : vector<8x128xf32>
    %408 = arith.addf %405, %407 : vector<8x128xf32>
    %409 = vector.broadcast %402 : f32 to vector<8x128xf32>
    %410 = arith.mulf %5, %409 : vector<8x128xf32>
    %411 = arith.addf %408, %410 : vector<8x128xf32>
    %412 = vector.broadcast %403 : f32 to vector<8x128xf32>
    %413 = arith.addf %411, %412 : vector<8x128xf32>
    %414 = vector.broadcast %400 : f32 to vector<8x128xf32>
    %415 = arith.mulf %3, %414 : vector<8x128xf32>
    %416 = vector.broadcast %401 : f32 to vector<8x128xf32>
    %417 = arith.mulf %5, %416 : vector<8x128xf32>
    %418 = arith.addf %415, %417 : vector<8x128xf32>
    %419 = vector.broadcast %402 : f32 to vector<8x128xf32>
    %420 = arith.mulf %7, %419 : vector<8x128xf32>
    %421 = arith.addf %418, %420 : vector<8x128xf32>
    %422 = vector.broadcast %403 : f32 to vector<8x128xf32>
    %423 = arith.addf %421, %422 : vector<8x128xf32>
    %424 = arith.maximumf %413, %423 : vector<8x128xf32>
    %cst_145 = arith.constant 0.000000e+00 : f32
    %425 = vector.broadcast %cst_145 : f32 to vector<8x128xf32>
    %426 = arith.maximumf %424, %425 : vector<8x128xf32>
    %c0_146 = arith.constant 0 : index
    %c1792 = arith.constant 1792 : index
    %427 = vector.load %arg6[%c0_146, %c1792] : memref<8x2048xf32, #tpu.memory_space<vmem>>, vector<8x128xf32>
    tpu.vector_store %arg6[%c0_146, %c1792], %426 {strides = array<i32>} : memref<8x2048xf32, #tpu.memory_space<vmem>>, vector<8x128xf32>,
    %c0_147 = arith.constant 0 : index
    %c15 = arith.constant 15 : index
    %428 = memref.load %arg2[%c0_147, %c15] : memref<4x16xf32, #tpu.memory_space<smem>>
    %c1_148 = arith.constant 1 : index
    %c15_149 = arith.constant 15 : index
    %429 = memref.load %arg2[%c1_148, %c15_149] : memref<4x16xf32, #tpu.memory_space<smem>>
    %c2_150 = arith.constant 2 : index
    %c15_151 = arith.constant 15 : index
    %430 = memref.load %arg2[%c2_150, %c15_151] : memref<4x16xf32, #tpu.memory_space<smem>>
    %c3_152 = arith.constant 3 : index
    %c15_153 = arith.constant 15 : index
    %431 = memref.load %arg2[%c3_152, %c15_153] : memref<4x16xf32, #tpu.memory_space<smem>>
    %432 = vector.broadcast %428 : f32 to vector<8x128xf32>
    %433 = arith.mulf %1, %432 : vector<8x128xf32>
    %434 = vector.broadcast %429 : f32 to vector<8x128xf32>
    %435 = arith.mulf %3, %434 : vector<8x128xf32>
    %436 = arith.addf %433, %435 : vector<8x128xf32>
    %437 = vector.broadcast %430 : f32 to vector<8x128xf32>
    %438 = arith.mulf %5, %437 : vector<8x128xf32>
    %439 = arith.addf %436, %438 : vector<8x128xf32>
    %440 = vector.broadcast %431 : f32 to vector<8x128xf32>
    %441 = arith.addf %439, %440 : vector<8x128xf32>
    %442 = vector.broadcast %428 : f32 to vector<8x128xf32>
    %443 = arith.mulf %3, %442 : vector<8x128xf32>
    %444 = vector.broadcast %429 : f32 to vector<8x128xf32>
    %445 = arith.mulf %5, %444 : vector<8x128xf32>
    %446 = arith.addf %443, %445 : vector<8x128xf32>
    %447 = vector.broadcast %430 : f32 to vector<8x128xf32>
    %448 = arith.mulf %7, %447 : vector<8x128xf32>
    %449 = arith.addf %446, %448 : vector<8x128xf32>
    %450 = vector.broadcast %431 : f32 to vector<8x128xf32>
    %451 = arith.addf %449, %450 : vector<8x128xf32>
    %452 = arith.maximumf %441, %451 : vector<8x128xf32>
    %cst_154 = arith.constant 0.000000e+00 : f32
    %453 = vector.broadcast %cst_154 : f32 to vector<8x128xf32>
    %454 = arith.maximumf %452, %453 : vector<8x128xf32>
    %c0_155 = arith.constant 0 : index
    %c1920 = arith.constant 1920 : index
    %455 = vector.load %arg6[%c0_155, %c1920] : memref<8x2048xf32, #tpu.memory_space<vmem>>, vector<8x128xf32>
    tpu.vector_store %arg6[%c0_155, %c1920], %454 {strides = array<i32>} : memref<8x2048xf32, #tpu.memory_space<vmem>>, vector<8x128xf32>,
    %c0_156 = arith.constant 0 : index
    %c0_157 = arith.constant 0 : index
    %456 = vector.load %arg6[%c0_156, %c0_157] : memref<8x2048xf32, #tpu.memory_space<vmem>>, vector<8x2048xf32>
    %c0_158 = arith.constant 0 : index
    %c0_159 = arith.constant 0 : index
    %457 = vector.load %arg3[%c0_158, %c0_159] : memref<2048x128xf32, #tpu.memory_space<vmem>>, vector<2048x128xf32>
    %cst_160 = arith.constant dense<0.000000e+00> : vector<8x128xf32>
    %458 = tpu.matmul %456, %457, %cst_160 {dimension_numbers = #tpu.dot_dimension_numbers<[1], [0], [0], [1], [0, 0, 1, 1], [], []>} : vector<8x2048xf32>, vector<2048x128xf32>, vector<8x128xf32> -> vector<8x128xf32>
    %c0_161 = arith.constant 0 : index
    %c0_162 = arith.constant 0 : index
    %459 = vector.load %arg4[%c0_161, %c0_162] : memref<1x128xf32, #tpu.memory_space<vmem>>, vector<1x128xf32>
    %460 = vector.broadcast %459 : vector<1x128xf32> to vector<8x128xf32>
    %461 = arith.addf %458, %460 : vector<8x128xf32>
    %c0_163 = arith.constant 0 : index
    %c0_164 = arith.constant 0 : index
    %462 = vector.load %arg5[%c0_163, %c0_164] : memref<8x128xf32, #tpu.memory_space<vmem>>, vector<8x128xf32>
    tpu.vector_store %arg5[%c0_163, %c0_164], %461 {strides = array<i32>} : memref<8x128xf32, #tpu.memory_space<vmem>>, vector<8x128xf32>,
    return
  }
  func.func @transform_0(%arg0: i32) -> (i32, i32, i32) {
    %c0_i32 = arith.constant 0 : i32
    %c0_i32_0 = arith.constant 0 : i32
    %c0_i32_1 = arith.constant 0 : i32
    return %c0_i32, %arg0, %c0_i32_0 : i32, i32, i32
  }
  func.func @transform_1(%arg0: i32) -> (i32, i32) {
    %c0_i32 = arith.constant 0 : i32
    %c0_i32_0 = arith.constant 0 : i32
    %c0_i32_1 = arith.constant 0 : i32
    return %c0_i32, %c0_i32_0 : i32, i32
  }
  func.func @transform_2(%arg0: i32) -> (i32, i32) {
    %c0_i32 = arith.constant 0 : i32
    %c0_i32_0 = arith.constant 0 : i32
    %c0_i32_1 = arith.constant 0 : i32
    return %c0_i32, %c0_i32_0 : i32, i32
  }
  func.func @transform_3(%arg0: i32) -> (i32, i32) {
    %c0_i32 = arith.constant 0 : i32
    %c0_i32_0 = arith.constant 0 : i32
    %c0_i32_1 = arith.constant 0 : i32
    return %c0_i32, %c0_i32_0 : i32, i32
  }
  func.func @transform_4(%arg0: i32) -> (i32, i32) {
    %c0_i32 = arith.constant 0 : i32
    %c0_i32_0 = arith.constant 0 : i32
    return %arg0, %c0_i32 : i32, i32
  }
}

</mosaic_0001>

<llo_original>
// kernel: tpu_custom_call.1
$region0: #{tpu_custom_call.1}
  #allocation0 [shape = 'u32[]', space=smem, size = 0x4, offset = 0x4, fixed_abs, tag = 'smem constant byte address 0x4 - core index']
  #allocation1 [shape = 'u32[72,128]{1,0:T(1,128)}', space=vmem, size = 0x9000, scoped, tag = 'internal scratch']
  #allocation2 [shape = 'f32[8,2048]{1,0:T(8,128)}', space=vmem, size = 0x10000, scoped, tag = 'scratch operand']
  %s0 = inlined_call_operand.hbm [shape: f32[4,8,128], index: 0, kind: input, shape index: {}]
  %s1 = inlined_call_operand.hbm [shape: f32[4,16], index: 1, kind: input, shape index: {}]
  %s2 = inlined_call_operand.hbm [shape: f32[2048,128], index: 2, kind: input, shape index: {}]
  %s3 = inlined_call_operand.vmem [shape: f32[1,128], index: 3, kind: input, shape index: {}]
  %s4 = inlined_call_operand.hbm [shape: f32[8,128], index: 4, kind: output, shape index: {}]
  %s5 = sld [smem:[#allocation0]]
  $region38: #{tpu_custom_call.1} parent=0
    _
  %s7 = ssub.s32 1, %s5
  %s8 = scalar_select 0, %s7, %s5
  $region1: #{tpu_custom_call.1} parent=0
    #allocation3 [shape = 'u8[16384]{0}', space=vmem, size = 0x4000, scoped, tag = 'input window, operand 0, single buffered']
    #allocation4 [shape = 's32[1]{0}', space=sflag, size = 0x4, scoped, tag = 'scoped memory for tpu_custom_call.1']
    #allocation5 [shape = 's32[1]{0}', space=sflag, size = 0x4, scoped, tag = 'scoped memory for tpu_custom_call.1']
    #allocation6 [shape = 's32[1]{0}', space=sflag, size = 0x4, scoped, tag = 'scoped memory for tpu_custom_call.1']
    #allocation7 [shape = 'u8[2048]{0}', space=smem, size = 0x800, scoped, tag = 'input window, operand 1, single buffered']
    #allocation8 [shape = 'u8[1048576]{0}', space=vmem, size = 0x100000, scoped, tag = 'input window, operand 2, single buffered']
    #allocation9 [shape = 's32[1]{0}', space=sflag, size = 0x4, scoped, tag = 'scoped memory for tpu_custom_call.1']
    #allocation10 [shape = 'u8[4096]{0}', space=vmem, size = 0x1000, scoped, tag = 'output window, operand 0, single buffered']
    %9 = vsyncpa [#allocation4], 0
    %10 = vsyncpa [#allocation6], 0
    %11 = vsyncpa [#allocation9], 0
    %12 = vsyncpa [#allocation5], 0
    // Predicated region
    $region2: #{tpu_custom_call.1} parent=1 // pred_check
      _
    $region3: #{tpu_custom_call.1} parent=1 // pred_check_branch
      %14 = sbr.rel (0) target = $region5
    $region4: #{tpu_custom_call.1} parent=1 // pred_region
      %16 = vsyncadd [#allocation4], 0
      %s17 = sshll.u32 %s0, 4
      %s18 = int_to_ptr.hbm [resolvable:$true] %s17
      %s19 = sshll.u32 [#allocation3], 4
      %s20 = int_to_ptr.vmem [resolvable:$true] %s19
      %25 = dma.hbm_to_vmem [thread:$0]  %s18, 512, %s20, [#allocation4], 128, 128, 8
    $region5: #{tpu_custom_call.1} parent=1 // pred_fallthru
      _
    // Predicated region
    $region6: #{tpu_custom_call.1} parent=1 // pred_check
      _
    $region7: #{tpu_custom_call.1} parent=1 // pred_check_branch
      %27 = sbr.rel (0) target = $region9
    $region8: #{tpu_custom_call.1} parent=1 // pred_region
      %29 = vsyncadd [#allocation6], 0
      %s31 = sshll.u32 %s1, 4
      %s32 = int_to_ptr.hbm [resolvable:$true] %s31
      %34 = dma.hbm_to_smem %s32, 64, [#allocation7], [#allocation6]
    $region9: #{tpu_custom_call.1} parent=1 // pred_fallthru
      _
    // Predicated region
    $region10: #{tpu_custom_call.1} parent=1 // pred_check
      _
    $region11: #{tpu_custom_call.1} parent=1 // pred_check_branch
      %36 = sbr.rel (0) target = $region13
    $region12: #{tpu_custom_call.1} parent=1 // pred_region
      %38 = vsyncadd [#allocation9], 0
      %s39 = sshll.u32 %s2, 4
      %s40 = int_to_ptr.hbm [resolvable:$true] %s39
      %s41 = sshll.u32 [#allocation8], 4
      %s42 = int_to_ptr.vmem [resolvable:$true] %s41
      %47 = dma.hbm_to_vmem [thread:$0]  %s40, 32768, %s42, [#allocation9], 128, 128, 8
    $region13: #{tpu_custom_call.1} parent=1 // pred_fallthru
      _
    // Predicated region
    $region14: #{tpu_custom_call.1} parent=1 // pred_check
      _
    $region15: #{tpu_custom_call.1} parent=1 // pred_check_branch
      %49 = sbr.rel (0) target = $region17
    $region16: #{tpu_custom_call.1} parent=1 // pred_region
      _
    $region17: #{tpu_custom_call.1} parent=1 // pred_fallthru
      _
    // Predicated region
    $region18: #{tpu_custom_call.1} parent=1 // pred_check
      _
    $region19: #{tpu_custom_call.1} parent=1 // pred_check_branch
      %51 = sbr.rel (0) target = $region21
    $region20: #{tpu_custom_call.1} parent=1 // pred_region
      %53 = dma.done [#allocation4], 512
    $region21: #{tpu_custom_call.1} parent=1 // pred_fallthru
      _
    // Predicated region
    $region22: #{tpu_custom_call.1} parent=1 // pred_check
      _
    $region23: #{tpu_custom_call.1} parent=1 // pred_check_branch
      %55 = sbr.rel (0) target = $region25
    $region24: #{tpu_custom_call.1} parent=1 // pred_region
      %57 = dma.done [#allocation6], 64
    $region25: #{tpu_custom_call.1} parent=1 // pred_fallthru
      _
    // Predicated region
    $region26: #{tpu_custom_call.1} parent=1 // pred_check
      _
    $region27: #{tpu_custom_call.1} parent=1 // pred_check_branch
      %59 = sbr.rel (0) target = $region29
    $region28: #{tpu_custom_call.1} parent=1 // pred_region
      %61 = dma.done [#allocation9], 32768
    $region29: #{tpu_custom_call.1} parent=1 // pred_fallthru
      _
    %62 = sfence
    %v63 = vld [vmem:[#allocation3] sm:$0xff]
    %s64 = scalar_lea.vmem [#allocation3], 8
    %v65 = vld [vmem:[%s64] sm:$0xff]
    %s66 = scalar_lea.vmem [#allocation3], 16
    %v67 = vld [vmem:[%s66] sm:$0xff]
    %s68 = scalar_lea.vmem [#allocation3], 24
    %v69 = vld [vmem:[%s68] sm:$0xff]
    %s70 = sld [smem:[#allocation7]]
    %s71 = sld [smem:[#allocation7 + $0x80]]
    %s72 = sld [smem:[#allocation7 + $0x100]]
    %s73 = sld [smem:[#allocation7 + $0x180]]
    %v74 = vstv %s70
    %v75 = vmul.f32 %v63, %v74
    %v76 = vstv %s71
    %v77 = vmul.f32 %v65, %v76
    %v78 = vadd.f32 %v75, %v77
    %v79 = vstv %s72
    %v80 = vmul.f32 %v67, %v79
    %v81 = vadd.f32 %v78, %v80
    %v82 = vstv %s73
    %v83 = vadd.f32 %v81, %v82
    %v84 = vmul.f32 %v65, %v74
    %v85 = vmul.f32 %v67, %v76
    %v86 = vadd.f32 %v84, %v85
    %v87 = vmul.f32 %v69, %v79
    %v88 = vadd.f32 %v86, %v87
    %v89 = vadd.f32 %v88, %v82
    %v90 = vmax.f32 %v83, %v89
    %v91 = vmax.f32 %v90, 0.0
    %92 = vst [vmem:[#allocation2] sm:$0xff] %v91
    %s93 = sld [smem:[#allocation7 + $0x1]]
    %s94 = sld [smem:[#allocation7 + $0x81]]
    %s95 = sld [smem:[#allocation7 + $0x101]]
    %s96 = sld [smem:[#allocation7 + $0x181]]
    %v97 = vstv %s93
    %v98 = vmul.f32 %v63, %v97
    %v99 = vstv %s94
    %v100 = vmul.f32 %v65, %v99
    %v101 = vadd.f32 %v98, %v100
    %v102 = vstv %s95
    %v103 = vmul.f32 %v67, %v102
    %v104 = vadd.f32 %v101, %v103
    %v105 = vstv %s96
    %v106 = vadd.f32 %v104, %v105
    %v107 = vmul.f32 %v65, %v97
    %v108 = vmul.f32 %v67, %v99
    %v109 = vadd.f32 %v107, %v108
    %v110 = vmul.f32 %v69, %v102
    %v111 = vadd.f32 %v109, %v110
    %v112 = vadd.f32 %v111, %v105
    %v113 = vmax.f32 %v106, %v112
    %v114 = vmax.f32 %v113, 0.0
    %115 = vst [vmem:[#allocation2 + $0x8] sm:$0xff] %v114
    %s116 = sld [smem:[#allocation7 + $0x2]]
    %s117 = sld [smem:[#allocation7 + $0x82]]
    %s118 = sld [smem:[#allocation7 + $0x102]]
    %s119 = sld [smem:[#allocation7 + $0x182]]
    %v120 = vstv %s116
    %v121 = vmul.f32 %v63, %v120
    %v122 = vstv %s117
    %v123 = vmul.f32 %v65, %v122
    %v124 = vadd.f32 %v121, %v123
    %v125 = vstv %s118
    %v126 = vmul.f32 %v67, %v125
    %v127 = vadd.f32 %v124, %v126
    %v128 = vstv %s119
    %v129 = vadd.f32 %v127, %v128
    %v130 = vmul.f32 %v65, %v120
    %v131 = vmul.f32 %v67, %v122
    %v132 = vadd.f32 %v130, %v131
    %v133 = vmul.f32 %v69, %v125
    %v134 = vadd.f32 %v132, %v133
    %v135 = vadd.f32 %v134, %v128
    %v136 = vmax.f32 %v129, %v135
    %v137 = vmax.f32 %v136, 0.0
    %138 = vst [vmem:[#allocation2 + $0x10] sm:$0xff] %v137
    %s139 = sld [smem:[#allocation7 + $0x3]]
    %s140 = sld [smem:[#allocation7 + $0x83]]
    %s141 = sld [smem:[#allocation7 + $0x103]]
    %s142 = sld [smem:[#allocation7 + $0x183]]
    %v143 = vstv %s139
    %v144 = vmul.f32 %v63, %v143
    %v145 = vstv %s140
    %v146 = vmul.f32 %v65, %v145
    %v147 = vadd.f32 %v144, %v146
    %v148 = vstv %s141
    %v149 = vmul.f32 %v67, %v148
    %v150 = vadd.f32 %v147, %v149
    %v151 = vstv %s142
    %v152 = vadd.f32 %v150, %v151
    %v153 = vmul.f32 %v65, %v143
    %v154 = vmul.f32 %v67, %v145
    %v155 = vadd.f32 %v153, %v154
    %v156 = vmul.f32 %v69, %v148
    %v157 = vadd.f32 %v155, %v156
    %v158 = vadd.f32 %v157, %v151
    %v159 = vmax.f32 %v152, %v158
    %v160 = vmax.f32 %v159, 0.0
    %161 = vst [vmem:[#allocation2 + $0x18] sm:$0xff] %v160
    %s162 = sld [smem:[#allocation7 + $0x4]]
    %s163 = sld [smem:[#allocation7 + $0x84]]
    %s164 = sld [smem:[#allocation7 + $0x104]]
    %s165 = sld [smem:[#allocation7 + $0x184]]
    %v166 = vstv %s162
    %v167 = vmul.f32 %v63, %v166
    %v168 = vstv %s163
    %v169 = vmul.f32 %v65, %v168
    %v170 = vadd.f32 %v167, %v169
    %v171 = vstv %s164
    %v172 = vmul.f32 %v67, %v171
    %v173 = vadd.f32 %v170, %v172
    %v174 = vstv %s165
    %v175 = vadd.f32 %v173, %v174
    %v176 = vmul.f32 %v65, %v166
    %v177 = vmul.f32 %v67, %v168
    %v178 = vadd.f32 %v176, %v177
    %v179 = vmul.f32 %v69, %v171
    %v180 = vadd.f32 %v178, %v179
    %v181 = vadd.f32 %v180, %v174
    %v182 = vmax.f32 %v175, %v181
    %v183 = vmax.f32 %v182, 0.0
    %184 = vst [vmem:[#allocation2 + $0x20] sm:$0xff] %v183
    %s185 = sld [smem:[#allocation7 + $0x5]]
    %s186 = sld [smem:[#allocation7 + $0x85]]
    %s187 = sld [smem:[#allocation7 + $0x105]]
    %s188 = sld [smem:[#allocation7 + $0x185]]
    %v189 = vstv %s185
    %v190 = vmul.f32 %v63, %v189
    %v191 = vstv %s186
    %v192 = vmul.f32 %v65, %v191
    %v193 = vadd.f32 %v190, %v192
    %v194 = vstv %s187
    %v195 = vmul.f32 %v67, %v194
    %v196 = vadd.f32 %v193, %v195
    %v197 = vstv %s188
    %v198 = vadd.f32 %v196, %v197
    %v199 = vmul.f32 %v65, %v189
    %v200 = vmul.f32 %v67, %v191
    %v201 = vadd.f32 %v199, %v200
    %v202 = vmul.f32 %v69, %v194
    %v203 = vadd.f32 %v201, %v202
    %v204 = vadd.f32 %v203, %v197
    %v205 = vmax.f32 %v198, %v204
    %v206 = vmax.f32 %v205, 0.0
    %207 = vst [vmem:[#allocation2 + $0x28] sm:$0xff] %v206
    %s208 = sld [smem:[#allocation7 + $0x6]]
    %s209 = sld [smem:[#allocation7 + $0x86]]
    %s210 = sld [smem:[#allocation7 + $0x106]]
    %s211 = sld [smem:[#allocation7 + $0x186]]
    %v212 = vstv %s208
    %v213 = vmul.f32 %v63, %v212
    %v214 = vstv %s209
    %v215 = vmul.f32 %v65, %v214
    %v216 = vadd.f32 %v213, %v215
    %v217 = vstv %s210
    %v218 = vmul.f32 %v67, %v217
    %v219 = vadd.f32 %v216, %v218
    %v220 = vstv %s211
    %v221 = vadd.f32 %v219, %v220
    %v222 = vmul.f32 %v65, %v212
    %v223 = vmul.f32 %v67, %v214
    %v224 = vadd.f32 %v222, %v223
    %v225 = vmul.f32 %v69, %v217
    %v226 = vadd.f32 %v224, %v225
    %v227 = vadd.f32 %v226, %v220
    %v228 = vmax.f32 %v221, %v227
    %v229 = vmax.f32 %v228, 0.0
    %230 = vst [vmem:[#allocation2 + $0x30] sm:$0xff] %v229
    %s231 = sld [smem:[#allocation7 + $0x7]]
    %s232 = sld [smem:[#allocation7 + $0x87]]
    %s233 = sld [smem:[#allocation7 + $0x107]]
    %s234 = sld [smem:[#allocation7 + $0x187]]
    %v235 = vstv %s231
    %v236 = vmul.f32 %v63, %v235
    %v237 = vstv %s232
    %v238 = vmul.f32 %v65, %v237
    %v239 = vadd.f32 %v236, %v238
    %v240 = vstv %s233
    %v241 = vmul.f32 %v67, %v240
    %v242 = vadd.f32 %v239, %v241
    %v243 = vstv %s234
    %v244 = vadd.f32 %v242, %v243
    %v245 = vmul.f32 %v65, %v235
    %v246 = vmul.f32 %v67, %v237
    %v247 = vadd.f32 %v245, %v246
    %v248 = vmul.f32 %v69, %v240
    %v249 = vadd.f32 %v247, %v248
    %v250 = vadd.f32 %v249, %v243
    %v251 = vmax.f32 %v244, %v250
    %v252 = vmax.f32 %v251, 0.0
    %253 = vst [vmem:[#allocation2 + $0x38] sm:$0xff] %v252
    %s254 = sld [smem:[#allocation7 + $0x8]]
    %s255 = sld [smem:[#allocation7 + $0x88]]
    %s256 = sld [smem:[#allocation7 + $0x108]]
    %s257 = sld [smem:[#allocation7 + $0x188]]
    %v258 = vstv %s254
    %v259 = vmul.f32 %v63, %v258
    %v260 = vstv %s255
    %v261 = vmul.f32 %v65, %v260
    %v262 = vadd.f32 %v259, %v261
    %v263 = vstv %s256
    %v264 = vmul.f32 %v67, %v263
    %v265 = vadd.f32 %v262, %v264
    %v266 = vstv %s257
    %v267 = vadd.f32 %v265, %v266
    %v268 = vmul.f32 %v65, %v258
    %v269 = vmul.f32 %v67, %v260
    %v270 = vadd.f32 %v268, %v269
    %v271 = vmul.f32 %v69, %v263
    %v272 = vadd.f32 %v270, %v271
    %v273 = vadd.f32 %v272, %v266
    %v274 = vmax.f32 %v267, %v273
    %v275 = vmax.f32 %v274, 0.0
    %276 = vst [vmem:[#allocation2 + $0x40] sm:$0xff] %v275
    %s277 = sld [smem:[#allocation7 + $0x9]]
    %s278 = sld [smem:[#allocation7 + $0x89]]
    %s279 = sld [smem:[#allocation7 + $0x109]]
    %s280 = sld [smem:[#allocation7 + $0x189]]
    %v281 = vstv %s277
    %v282 = vmul.f32 %v63, %v281
    %v283 = vstv %s278
    %v284 = vmul.f32 %v65, %v283
    %v285 = vadd.f32 %v282, %v284
    %v286 = vstv %s279
    %v287 = vmul.f32 %v67, %v286
    %v288 = vadd.f32 %v285, %v287
    %v289 = vstv %s280
    %v290 = vadd.f32 %v288, %v289
    %v291 = vmul.f32 %v65, %v281
    %v292 = vmul.f32 %v67, %v283
    %v293 = vadd.f32 %v291, %v292
    %v294 = vmul.f32 %v69, %v286
    %v295 = vadd.f32 %v293, %v294
    %v296 = vadd.f32 %v295, %v289
    %v297 = vmax.f32 %v290, %v296
    %v298 = vmax.f32 %v297, 0.0
    %299 = vst [vmem:[#allocation2 + $0x48] sm:$0xff] %v298
    %s300 = sld [smem:[#allocation7 + $0xa]]
    %s301 = sld [smem:[#allocation7 + $0x8a]]
    %s302 = sld [smem:[#allocation7 + $0x10a]]
    %s303 = sld [smem:[#allocation7 + $0x18a]]
    %v304 = vstv %s300
    %v305 = vmul.f32 %v63, %v304
    %v306 = vstv %s301
    %v307 = vmul.f32 %v65, %v306
    %v308 = vadd.f32 %v305, %v307
    %v309 = vstv %s302
    %v310 = vmul.f32 %v67, %v309
    %v311 = vadd.f32 %v308, %v310
    %v312 = vstv %s303
    %v313 = vadd.f32 %v311, %v312
    %v314 = vmul.f32 %v65, %v304
    %v315 = vmul.f32 %v67, %v306
    %v316 = vadd.f32 %v314, %v315
    %v317 = vmul.f32 %v69, %v309
    %v318 = vadd.f32 %v316, %v317
    %v319 = vadd.f32 %v318, %v312
    %v320 = vmax.f32 %v313, %v319
    %v321 = vmax.f32 %v320, 0.0
    %322 = vst [vmem:[#allocation2 + $0x50] sm:$0xff] %v321
    %s323 = sld [smem:[#allocation7 + $0xb]]
    %s324 = sld [smem:[#allocation7 + $0x8b]]
    %s325 = sld [smem:[#allocation7 + $0x10b]]
    %s326 = sld [smem:[#allocation7 + $0x18b]]
    %v327 = vstv %s323
    %v328 = vmul.f32 %v63, %v327
    %v329 = vstv %s324
    %v330 = vmul.f32 %v65, %v329
    %v331 = vadd.f32 %v328, %v330
    %v332 = vstv %s325
    %v333 = vmul.f32 %v67, %v332
    %v334 = vadd.f32 %v331, %v333
    %v335 = vstv %s326
    %v336 = vadd.f32 %v334, %v335
    %v337 = vmul.f32 %v65, %v327
    %v338 = vmul.f32 %v67, %v329
    %v339 = vadd.f32 %v337, %v338
    %v340 = vmul.f32 %v69, %v332
    %v341 = vadd.f32 %v339, %v340
    %v342 = vadd.f32 %v341, %v335
    %v343 = vmax.f32 %v336, %v342
    %v344 = vmax.f32 %v343, 0.0
    %345 = vst [vmem:[#allocation2 + $0x58] sm:$0xff] %v344
    %s346 = sld [smem:[#allocation7 + $0xc]]
    %s347 = sld [smem:[#allocation7 + $0x8c]]
    %s348 = sld [smem:[#allocation7 + $0x10c]]
    %s349 = sld [smem:[#allocation7 + $0x18c]]
    %v350 = vstv %s346
    %v351 = vmul.f32 %v63, %v350
    %v352 = vstv %s347
    %v353 = vmul.f32 %v65, %v352
    %v354 = vadd.f32 %v351, %v353
    %v355 = vstv %s348
    %v356 = vmul.f32 %v67, %v355
    %v357 = vadd.f32 %v354, %v356
    %v358 = vstv %s349
    %v359 = vadd.f32 %v357, %v358
    %v360 = vmul.f32 %v65, %v350
    %v361 = vmul.f32 %v67, %v352
    %v362 = vadd.f32 %v360, %v361
    %v363 = vmul.f32 %v69, %v355
    %v364 = vadd.f32 %v362, %v363
    %v365 = vadd.f32 %v364, %v358
    %v366 = vmax.f32 %v359, %v365
    %v367 = vmax.f32 %v366, 0.0
    %368 = vst [vmem:[#allocation2 + $0x60] sm:$0xff] %v367
    %s369 = sld [smem:[#allocation7 + $0xd]]
    %s370 = sld [smem:[#allocation7 + $0x8d]]
    %s371 = sld [smem:[#allocation7 + $0x10d]]
    %s372 = sld [smem:[#allocation7 + $0x18d]]
    %v373 = vstv %s369
    %v374 = vmul.f32 %v63, %v373
    %v375 = vstv %s370
    %v376 = vmul.f32 %v65, %v375
    %v377 = vadd.f32 %v374, %v376
    %v378 = vstv %s371
    %v379 = vmul.f32 %v67, %v378
    %v380 = vadd.f32 %v377, %v379
    %v381 = vstv %s372
    %v382 = vadd.f32 %v380, %v381
    %v383 = vmul.f32 %v65, %v373
    %v384 = vmul.f32 %v67, %v375
    %v385 = vadd.f32 %v383, %v384
    %v386 = vmul.f32 %v69, %v378
    %v387 = vadd.f32 %v385, %v386
    %v388 = vadd.f32 %v387, %v381
    %v389 = vmax.f32 %v382, %v388
    %v390 = vmax.f32 %v389, 0.0
    %391 = vst [vmem:[#allocation2 + $0x68] sm:$0xff] %v390
    %s392 = sld [smem:[#allocation7 + $0xe]]
    %s393 = sld [smem:[#allocation7 + $0x8e]]
    %s394 = sld [smem:[#allocation7 + $0x10e]]
    %s395 = sld [smem:[#allocation7 + $0x18e]]
    %v396 = vstv %s392
    %v397 = vmul.f32 %v63, %v396
    %v398 = vstv %s393
    %v399 = vmul.f32 %v65, %v398
    %v400 = vadd.f32 %v397, %v399
    %v401 = vstv %s394
    %v402 = vmul.f32 %v67, %v401
    %v403 = vadd.f32 %v400, %v402
    %v404 = vstv %s395
    %v405 = vadd.f32 %v403, %v404
    %v406 = vmul.f32 %v65, %v396
    %v407 = vmul.f32 %v67, %v398
    %v408 = vadd.f32 %v406, %v407
    %v409 = vmul.f32 %v69, %v401
    %v410 = vadd.f32 %v408, %v409
    %v411 = vadd.f32 %v410, %v404
    %v412 = vmax.f32 %v405, %v411
    %v413 = vmax.f32 %v412, 0.0
    %414 = vst [vmem:[#allocation2 + $0x70] sm:$0xff] %v413
    %s415 = sld [smem:[#allocation7 + $0xf]]
    %s416 = sld [smem:[#allocation7 + $0x8f]]
    %s417 = sld [smem:[#allocation7 + $0x10f]]
    %s418 = sld [smem:[#allocation7 + $0x18f]]
    %v419 = vstv %s415
    %v420 = vmul.f32 %v63, %v419
    %v421 = vstv %s416
    %v422 = vmul.f32 %v65, %v421
    %v423 = vadd.f32 %v420, %v422
    %v424 = vstv %s417
    %v425 = vmul.f32 %v67, %v424
    %v426 = vadd.f32 %v423, %v425
    %v427 = vstv %s418
    %v428 = vadd.f32 %v426, %v427
    %v429 = vmul.f32 %v65, %v419
    %v430 = vmul.f32 %v67, %v421
    %v431 = vadd.f32 %v429, %v430
    %v432 = vmul.f32 %v69, %v424
    %v433 = vadd.f32 %v431, %v432
    %v434 = vadd.f32 %v433, %v427
    %v435 = vmax.f32 %v428, %v434
    %v436 = vmax.f32 %v435, 0.0
    %437 = vst [vmem:[#allocation2 + $0x78] sm:$0xff] %v436
    %v438 = vld [vmem:[#allocation2] sm:$0xff]
    %v439 = vld [vmem:[#allocation2 + $0x8] sm:$0xff]
    %v440 = vld [vmem:[#allocation2 + $0x10] sm:$0xff]
    %v441 = vld [vmem:[#allocation2 + $0x18] sm:$0xff]
    %v442 = vld [vmem:[#allocation2 + $0x20] sm:$0xff]
    %v443 = vld [vmem:[#allocation2 + $0x28] sm:$0xff]
    %v444 = vld [vmem:[#allocation2 + $0x30] sm:$0xff]
    %v445 = vld [vmem:[#allocation2 + $0x38] sm:$0xff]
    %v446 = vld [vmem:[#allocation2 + $0x40] sm:$0xff]
    %v447 = vld [vmem:[#allocation2 + $0x48] sm:$0xff]
    %v448 = vld [vmem:[#allocation2 + $0x50] sm:$0xff]
    %v449 = vld [vmem:[#allocation2 + $0x58] sm:$0xff]
    %v450 = vld [vmem:[#allocation2 + $0x60] sm:$0xff]
    %v451 = vld [vmem:[#allocation2 + $0x68] sm:$0xff]
    %v452 = vld [vmem:[#allocation2 + $0x70] sm:$0xff]
    %v453 = vld [vmem:[#allocation2 + $0x78] sm:$0xff]
    %v454 = vld [vmem:[#allocation8] sm:$0xff]
    %v455 = vld [vmem:[#allocation8 + $0x8] sm:$0xff]
    %v456 = vld [vmem:[#allocation8 + $0x10] sm:$0xff]
    %v457 = vld [vmem:[#allocation8 + $0x18] sm:$0xff]
    %v458 = vld [vmem:[#allocation8 + $0x20] sm:$0xff]
    %v459 = vld [vmem:[#allocation8 + $0x28] sm:$0xff]
    %v460 = vld [vmem:[#allocation8 + $0x30] sm:$0xff]
    %v461 = vld [vmem:[#allocation8 + $0x38] sm:$0xff]
    %v462 = vld [vmem:[#allocation8 + $0x40] sm:$0xff]
    %v463 = vld [vmem:[#allocation8 + $0x48] sm:$0xff]
    %v464 = vld [vmem:[#allocation8 + $0x50] sm:$0xff]
    %v465 = vld [vmem:[#allocation8 + $0x58] sm:$0xff]
    %v466 = vld [vmem:[#allocation8 + $0x60] sm:$0xff]
    %v467 = vld [vmem:[#allocation8 + $0x68] sm:$0xff]
    %v468 = vld [vmem:[#allocation8 + $0x70] sm:$0xff]
    %v469 = vld [vmem:[#allocation8 + $0x78] sm:$0xff]
    %v470 = vld [vmem:[#allocation8 + $0x80] sm:$0xff]
    %v471 = vld [vmem:[#allocation8 + $0x88] sm:$0xff]
    %v472 = vld [vmem:[#allocation8 + $0x90] sm:$0xff]
    %v473 = vld [vmem:[#allocation8 + $0x98] sm:$0xff]
    %v474 = vld [vmem:[#allocation8 + $0xa0] sm:$0xff]
    %v475 = vld [vmem:[#allocation8 + $0xa8] sm:$0xff]
    %v476 = vld [vmem:[#allocation8 + $0xb0] sm:$0xff]
    %v477 = vld [vmem:[#allocation8 + $0xb8] sm:$0xff]
    %v478 = vld [vmem:[#allocation8 + $0xc0] sm:$0xff]
    %v479 = vld [vmem:[#allocation8 + $0xc8] sm:$0xff]
    %v480 = vld [vmem:[#allocation8 + $0xd0] sm:$0xff]
    %v481 = vld [vmem:[#allocation8 + $0xd8] sm:$0xff]
    %v482 = vld [vmem:[#allocation8 + $0xe0] sm:$0xff]
    %v483 = vld [vmem:[#allocation8 + $0xe8] sm:$0xff]
    %v484 = vld [vmem:[#allocation8 + $0xf0] sm:$0xff]
    %v485 = vld [vmem:[#allocation8 + $0xf8] sm:$0xff]
    %v486 = vld [vmem:[#allocation8 + $0x100] sm:$0xff]
    %v487 = vld [vmem:[#allocation8 + $0x108] sm:$0xff]
    %v488 = vld [vmem:[#allocation8 + $0x110] sm:$0xff]
    %v489 = vld [vmem:[#allocation8 + $0x118] sm:$0xff]
    %v490 = vld [vmem:[#allocation8 + $0x120] sm:$0xff]
    %v491 = vld [vmem:[#allocation8 + $0x128] sm:$0xff]
    %v492 = vld [vmem:[#allocation8 + $0x130] sm:$0xff]
    %v493 = vld [vmem:[#allocation8 + $0x138] sm:$0xff]
    %v494 = vld [vmem:[#allocation8 + $0x140] sm:$0xff]
    %v495 = vld [vmem:[#allocation8 + $0x148] sm:$0xff]
    %v496 = vld [vmem:[#allocation8 + $0x150] sm:$0xff]
    %v497 = vld [vmem:[#allocation8 + $0x158] sm:$0xff]
    %v498 = vld [vmem:[#allocation8 + $0x160] sm:$0xff]
    %v499 = vld [vmem:[#allocation8 + $0x168] sm:$0xff]
    %v500 = vld [vmem:[#allocation8 + $0x170] sm:$0xff]
    %v501 = vld [vmem:[#allocation8 + $0x178] sm:$0xff]
    %v502 = vld [vmem:[#allocation8 + $0x180] sm:$0xff]
    %v503 = vld [vmem:[#allocation8 + $0x188] sm:$0xff]
    %v504 = vld [vmem:[#allocation8 + $0x190] sm:$0xff]
    %v505 = vld [vmem:[#allocation8 + $0x198] sm:$0xff]
    %v506 = vld [vmem:[#allocation8 + $0x1a0] sm:$0xff]
    %v507 = vld [vmem:[#allocation8 + $0x1a8] sm:$0xff]
    %v508 = vld [vmem:[#allocation8 + $0x1b0] sm:$0xff]
    %v509 = vld [vmem:[#allocation8 + $0x1b8] sm:$0xff]
    %v510 = vld [vmem:[#allocation8 + $0x1c0] sm:$0xff]
    %v511 = vld [vmem:[#allocation8 + $0x1c8] sm:$0xff]
    %v512 = vld [vmem:[#allocation8 + $0x1d0] sm:$0xff]
    %v513 = vld [vmem:[#allocation8 + $0x1d8] sm:$0xff]
    %v514 = vld [vmem:[#allocation8 + $0x1e0] sm:$0xff]
    %v515 = vld [vmem:[#allocation8 + $0x1e8] sm:$0xff]
    %v516 = vld [vmem:[#allocation8 + $0x1f0] sm:$0xff]
    %v517 = vld [vmem:[#allocation8 + $0x1f8] sm:$0xff]
    %v518 = vld [vmem:[#allocation8 + $0x200] sm:$0xff]
    %v519 = vld [vmem:[#allocation8 + $0x208] sm:$0xff]
    %v520 = vld [vmem:[#allocation8 + $0x210] sm:$0xff]
    %v521 = vld [vmem:[#allocation8 + $0x218] sm:$0xff]
    %v522 = vld [vmem:[#allocation8 + $0x220] sm:$0xff]
    %v523 = vld [vmem:[#allocation8 + $0x228] sm:$0xff]
    %v524 = vld [vmem:[#allocation8 + $0x230] sm:$0xff]
    %v525 = vld [vmem:[#allocation8 + $0x238] sm:$0xff]
    %v526 = vld [vmem:[#allocation8 + $0x240] sm:$0xff]
    %v527 = vld [vmem:[#allocation8 + $0x248] sm:$0xff]
    %v528 = vld [vmem:[#allocation8 + $0x250] sm:$0xff]
    %v529 = vld [vmem:[#allocation8 + $0x258] sm:$0xff]
    %v530 = vld [vmem:[#allocation8 + $0x260] sm:$0xff]
    %v531 = vld [vmem:[#allocation8 + $0x268] sm:$0xff]
    %v532 = vld [vmem:[#allocation8 + $0x270] sm:$0xff]
    %v533 = vld [vmem:[#allocation8 + $0x278] sm:$0xff]
    %v534 = vld [vmem:[#allocation8 + $0x280] sm:$0xff]
    %v535 = vld [vmem:[#allocation8 + $0x288] sm:$0xff]
    %v536 = vld [vmem:[#allocation8 + $0x290] sm:$0xff]
    %v537 = vld [vmem:[#allocation8 + $0x298] sm:$0xff]
    %v538 = vld [vmem:[#allocation8 + $0x2a0] sm:$0xff]
    %v539 = vld [vmem:[#allocation8 + $0x2a8] sm:$0xff]
    %v540 = vld [vmem:[#allocation8 + $0x2b0] sm:$0xff]
    %v541 = vld [vmem:[#allocation8 + $0x2b8] sm:$0xff]
    %v542 = vld [vmem:[#allocation8 + $0x2c0] sm:$0xff]
    %v543 = vld [vmem:[#allocation8 + $0x2c8] sm:$0xff]
    %v544 = vld [vmem:[#allocation8 + $0x2d0] sm:$0xff]
    %v545 = vld [vmem:[#allocation8 + $0x2d8] sm:$0xff]
    %v546 = vld [vmem:[#allocation8 + $0x2e0] sm:$0xff]
    %v547 = vld [vmem:[#allocation8 + $0x2e8] sm:$0xff]
    %v548 = vld [vmem:[#allocation8 + $0x2f0] sm:$0xff]
    %v549 = vld [vmem:[#allocation8 + $0x2f8] sm:$0xff]
    %v550 = vld [vmem:[#allocation8 + $0x300] sm:$0xff]
    %v551 = vld [vmem:[#allocation8 + $0x308] sm:$0xff]
    %v552 = vld [vmem:[#allocation8 + $0x310] sm:$0xff]
    %v553 = vld [vmem:[#allocation8 + $0x318] sm:$0xff]
    %v554 = vld [vmem:[#allocation8 + $0x320] sm:$0xff]
    %v555 = vld [vmem:[#allocation8 + $0x328] sm:$0xff]
    %v556 = vld [vmem:[#allocation8 + $0x330] sm:$0xff]
    %v557 = vld [vmem:[#allocation8 + $0x338] sm:$0xff]
    %v558 = vld [vmem:[#allocation8 + $0x340] sm:$0xff]
    %v559 = vld [vmem:[#allocation8 + $0x348] sm:$0xff]
    %v560 = vld [vmem:[#allocation8 + $0x350] sm:$0xff]
    %v561 = vld [vmem:[#allocation8 + $0x358] sm:$0xff]
    %v562 = vld [vmem:[#allocation8 + $0x360] sm:$0xff]
    %v563 = vld [vmem:[#allocation8 + $0x368] sm:$0xff]
    %v564 = vld [vmem:[#allocation8 + $0x370] sm:$0xff]
    %v565 = vld [vmem:[#allocation8 + $0x378] sm:$0xff]
    %v566 = vld [vmem:[#allocation8 + $0x380] sm:$0xff]
    %v567 = vld [vmem:[#allocation8 + $0x388] sm:$0xff]
    %v568 = vld [vmem:[#allocation8 + $0x390] sm:$0xff]
    %v569 = vld [vmem:[#allocation8 + $0x398] sm:$0xff]
    %v570 = vld [vmem:[#allocation8 + $0x3a0] sm:$0xff]
    %v571 = vld [vmem:[#allocation8 + $0x3a8] sm:$0xff]
    %v572 = vld [vmem:[#allocation8 + $0x3b0] sm:$0xff]
    %v573 = vld [vmem:[#allocation8 + $0x3b8] sm:$0xff]
    %v574 = vld [vmem:[#allocation8 + $0x3c0] sm:$0xff]
    %v575 = vld [vmem:[#allocation8 + $0x3c8] sm:$0xff]
    %v576 = vld [vmem:[#allocation8 + $0x3d0] sm:$0xff]
    %v577 = vld [vmem:[#allocation8 + $0x3d8] sm:$0xff]
    %v578 = vld [vmem:[#allocation8 + $0x3e0] sm:$0xff]
    %v579 = vld [vmem:[#allocation8 + $0x3e8] sm:$0xff]
    %v580 = vld [vmem:[#allocation8 + $0x3f0] sm:$0xff]
    %v581 = vld [vmem:[#allocation8 + $0x3f8] sm:$0xff]
    %v582 = vld [vmem:[#allocation8 + $0x400] sm:$0xff]
    %v583 = vld [vmem:[#allocation8 + $0x408] sm:$0xff]
    %v584 = vld [vmem:[#allocation8 + $0x410] sm:$0xff]
    %v585 = vld [vmem:[#allocation8 + $0x418] sm:$0xff]
    %v586 = vld [vmem:[#allocation8 + $0x420] sm:$0xff]
    %v587 = vld [vmem:[#allocation8 + $0x428] sm:$0xff]
    %v588 = vld [vmem:[#allocation8 + $0x430] sm:$0xff]
    %v589 = vld [vmem:[#allocation8 + $0x438] sm:$0xff]
    %v590 = vld [vmem:[#allocation8 + $0x440] sm:$0xff]
    %v591 = vld [vmem:[#allocation8 + $0x448] sm:$0xff]
    %v592 = vld [vmem:[#allocation8 + $0x450] sm:$0xff]
    %v593 = vld [vmem:[#allocation8 + $0x458] sm:$0xff]
    %v594 = vld [vmem:[#allocation8 + $0x460] sm:$0xff]
    %v595 = vld [vmem:[#allocation8 + $0x468] sm:$0xff]
    %v596 = vld [vmem:[#allocation8 + $0x470] sm:$0xff]
    %v597 = vld [vmem:[#allocation8 + $0x478] sm:$0xff]
    %v598 = vld [vmem:[#allocation8 + $0x480] sm:$0xff]
    %v599 = vld [vmem:[#allocation8 + $0x488] sm:$0xff]
    %v600 = vld [vmem:[#allocation8 + $0x490] sm:$0xff]
    %v601 = vld [vmem:[#allocation8 + $0x498] sm:$0xff]
    %v602 = vld [vmem:[#allocation8 + $0x4a0] sm:$0xff]
    %v603 = vld [vmem:[#allocation8 + $0x4a8] sm:$0xff]
    %v604 = vld [vmem:[#allocation8 + $0x4b0] sm:$0xff]
    %v605 = vld [vmem:[#allocation8 + $0x4b8] sm:$0xff]
    %v606 = vld [vmem:[#allocation8 + $0x4c0] sm:$0xff]
    %v607 = vld [vmem:[#allocation8 + $0x4c8] sm:$0xff]
    %v608 = vld [vmem:[#allocation8 + $0x4d0] sm:$0xff]
    %v609 = vld [vmem:[#allocation8 + $0x4d8] sm:$0xff]
    %v610 = vld [vmem:[#allocation8 + $0x4e0] sm:$0xff]
    %v611 = vld [vmem:[#allocation8 + $0x4e8] sm:$0xff]
    %v612 = vld [vmem:[#allocation8 + $0x4f0] sm:$0xff]
    %v613 = vld [vmem:[#allocation8 + $0x4f8] sm:$0xff]
    %v614 = vld [vmem:[#allocation8 + $0x500] sm:$0xff]
    %v615 = vld [vmem:[#allocation8 + $0x508] sm:$0xff]
    %v616 = vld [vmem:[#allocation8 + $0x510] sm:$0xff]
    %v617 = vld [vmem:[#allocation8 + $0x518] sm:$0xff]
    %v618 = vld [vmem:[#allocation8 + $0x520] sm:$0xff]
    %v619 = vld [vmem:[#allocation8 + $0x528] sm:$0xff]
    %v620 = vld [vmem:[#allocation8 + $0x530] sm:$0xff]
    %v621 = vld [vmem:[#allocation8 + $0x538] sm:$0xff]
    %v622 = vld [vmem:[#allocation8 + $0x540] sm:$0xff]
    %v623 = vld [vmem:[#allocation8 + $0x548] sm:$0xff]
    %v624 = vld [vmem:[#allocation8 + $0x550] sm:$0xff]
    %v625 = vld [vmem:[#allocation8 + $0x558] sm:$0xff]
    %v626 = vld [vmem:[#allocation8 + $0x560] sm:$0xff]
    %v627 = vld [vmem:[#allocation8 + $0x568] sm:$0xff]
    %v628 = vld [vmem:[#allocation8 + $0x570] sm:$0xff]
    %v629 = vld [vmem:[#allocation8 + $0x578] sm:$0xff]
    %v630 = vld [vmem:[#allocation8 + $0x580] sm:$0xff]
    %v631 = vld [vmem:[#allocation8 + $0x588] sm:$0xff]
    %v632 = vld [vmem:[#allocation8 + $0x590] sm:$0xff]
    %v633 = vld [vmem:[#allocation8 + $0x598] sm:$0xff]
    %v634 = vld [vmem:[#allocation8 + $0x5a0] sm:$0xff]
    %v635 = vld [vmem:[#allocation8 + $0x5a8] sm:$0xff]
    %v636 = vld [vmem:[#allocation8 + $0x5b0] sm:$0xff]
    %v637 = vld [vmem:[#allocation8 + $0x5b8] sm:$0xff]
    %v638 = vld [vmem:[#allocation8 + $0x5c0] sm:$0xff]
    %v639 = vld [vmem:[#allocation8 + $0x5c8] sm:$0xff]
    %v640 = vld [vmem:[#allocation8 + $0x5d0] sm:$0xff]
    %v641 = vld [vmem:[#allocation8 + $0x5d8] sm:$0xff]
    %v642 = vld [vmem:[#allocation8 + $0x5e0] sm:$0xff]
    %v643 = vld [vmem:[#allocation8 + $0x5e8] sm:$0xff]
    %v644 = vld [vmem:[#allocation8 + $0x5f0] sm:$0xff]
    %v645 = vld [vmem:[#allocation8 + $0x5f8] sm:$0xff]
    %v646 = vld [vmem:[#allocation8 + $0x600] sm:$0xff]
    %v647 = vld [vmem:[#allocation8 + $0x608] sm:$0xff]
    %v648 = vld [vmem:[#allocation8 + $0x610] sm:$0xff]
    %v649 = vld [vmem:[#allocation8 + $0x618] sm:$0xff]
    %v650 = vld [vmem:[#allocation8 + $0x620] sm:$0xff]
    %v651 = vld [vmem:[#allocation8 + $0x628] sm:$0xff]
    %v652 = vld [vmem:[#allocation8 + $0x630] sm:$0xff]
    %v653 = vld [vmem:[#allocation8 + $0x638] sm:$0xff]
    %v654 = vld [vmem:[#allocation8 + $0x640] sm:$0xff]
    %v655 = vld [vmem:[#allocation8 + $0x648] sm:$0xff]
    %v656 = vld [vmem:[#allocation8 + $0x650] sm:$0xff]
    %v657 = vld [vmem:[#allocation8 + $0x658] sm:$0xff]
    %v658 = vld [vmem:[#allocation8 + $0x660] sm:$0xff]
    %v659 = vld [vmem:[#allocation8 + $0x668] sm:$0xff]
    %v660 = vld [vmem:[#allocation8 + $0x670] sm:$0xff]
    %v661 = vld [vmem:[#allocation8 + $0x678] sm:$0xff]
    %v662 = vld [vmem:[#allocation8 + $0x680] sm:$0xff]
    %v663 = vld [vmem:[#allocation8 + $0x688] sm:$0xff]
    %v664 = vld [vmem:[#allocation8 + $0x690] sm:$0xff]
    %v665 = vld [vmem:[#allocation8 + $0x698] sm:$0xff]
    %v666 = vld [vmem:[#allocation8 + $0x6a0] sm:$0xff]
    %v667 = vld [vmem:[#allocation8 + $0x6a8] sm:$0xff]
    %v668 = vld [vmem:[#allocation8 + $0x6b0] sm:$0xff]
    %v669 = vld [vmem:[#allocation8 + $0x6b8] sm:$0xff]
    %v670 = vld [vmem:[#allocation8 + $0x6c0] sm:$0xff]
    %v671 = vld [vmem:[#allocation8 + $0x6c8] sm:$0xff]
    %v672 = vld [vmem:[#allocation8 + $0x6d0] sm:$0xff]
    %v673 = vld [vmem:[#allocation8 + $0x6d8] sm:$0xff]
    %v674 = vld [vmem:[#allocation8 + $0x6e0] sm:$0xff]
    %v675 = vld [vmem:[#allocation8 + $0x6e8] sm:$0xff]
    %v676 = vld [vmem:[#allocation8 + $0x6f0] sm:$0xff]
    %v677 = vld [vmem:[#allocation8 + $0x6f8] sm:$0xff]
    %v678 = vld [vmem:[#allocation8 + $0x700] sm:$0xff]
    %v679 = vld [vmem:[#allocation8 + $0x708] sm:$0xff]
    %v680 = vld [vmem:[#allocation8 + $0x710] sm:$0xff]
    %v681 = vld [vmem:[#allocation8 + $0x718] sm:$0xff]
    %v682 = vld [vmem:[#allocation8 + $0x720] sm:$0xff]
    %v683 = vld [vmem:[#allocation8 + $0x728] sm:$0xff]
    %v684 = vld [vmem:[#allocation8 + $0x730] sm:$0xff]
    %v685 = vld [vmem:[#allocation8 + $0x738] sm:$0xff]
    %v686 = vld [vmem:[#allocation8 + $0x740] sm:$0xff]
    %v687 = vld [vmem:[#allocation8 + $0x748] sm:$0xff]
    %v688 = vld [vmem:[#allocation8 + $0x750] sm:$0xff]
    %v689 = vld [vmem:[#allocation8 + $0x758] sm:$0xff]
    %v690 = vld [vmem:[#allocation8 + $0x760] sm:$0xff]
    %v691 = vld [vmem:[#allocation8 + $0x768] sm:$0xff]
    %v692 = vld [vmem:[#allocation8 + $0x770] sm:$0xff]
    %v693 = vld [vmem:[#allocation8 + $0x778] sm:$0xff]
    %v694 = vld [vmem:[#allocation8 + $0x780] sm:$0xff]
    %v695 = vld [vmem:[#allocation8 + $0x788] sm:$0xff]
    %v696 = vld [vmem:[#allocation8 + $0x790] sm:$0xff]
    %v697 = vld [vmem:[#allocation8 + $0x798] sm:$0xff]
    %v698 = vld [vmem:[#allocation8 + $0x7a0] sm:$0xff]
    %v699 = vld [vmem:[#allocation8 + $0x7a8] sm:$0xff]
    %v700 = vld [vmem:[#allocation8 + $0x7b0] sm:$0xff]
    %v701 = vld [vmem:[#allocation8 + $0x7b8] sm:$0xff]
    %v702 = vld [vmem:[#allocation8 + $0x7c0] sm:$0xff]
    %v703 = vld [vmem:[#allocation8 + $0x7c8] sm:$0xff]
    %v704 = vld [vmem:[#allocation8 + $0x7d0] sm:$0xff]
    %v705 = vld [vmem:[#allocation8 + $0x7d8] sm:$0xff]
    %v706 = vld [vmem:[#allocation8 + $0x7e0] sm:$0xff]
    %v707 = vld [vmem:[#allocation8 + $0x7e8] sm:$0xff]
    %v708 = vld [vmem:[#allocation8 + $0x7f0] sm:$0xff]
    %v709 = vld [vmem:[#allocation8 + $0x7f8] sm:$0xff]
    %v710 = vld [vmem:[%s3] sm:$0x1]
    %v712 = vperm.slane %v710, 0
    %714 = vmatpush.msra.mxu0 %v469
    %715 = vmatpush.msra.mxu0 %v468
    %716 = vmatpush.msra.mxu0 %v467
    %717 = vmatpush.msra.mxu0 %v466
    %718 = vmatpush.msra.mxu0 %v465
    %719 = vmatpush.msra.mxu0 %v464
    %720 = vmatpush.msra.mxu0 %v463
    %721 = vmatpush.msra.mxu0 %v462
    %722 = vmatpush.msra.mxu0 %v461
    %723 = vmatpush.msra.mxu0 %v460
    %724 = vmatpush.msra.mxu0 %v459
    %725 = vmatpush.msra.mxu0 %v458
    %726 = vmatpush.msra.mxu0 %v457
    %727 = vmatpush.msra.mxu0 %v456
    %728 = vmatpush.msra.mxu0 %v455
    %729 = vmatpush.msra.mxu0 %v454
    %730 = vmatmul.f32.gmra.mxu0 %v438
    %v731 = vpop.f32.mrf.mxu0
    %v732 = vadd.f32 %v712, %v731
    %733 = vdwg.mxu0
    %734 = vmatpush.msra.mxu0 %v485
    %735 = vmatpush.msra.mxu0 %v484
    %736 = vmatpush.msra.mxu0 %v483
    %737 = vmatpush.msra.mxu0 %v482
    %738 = vmatpush.msra.mxu0 %v481
    %739 = vmatpush.msra.mxu0 %v480
    %740 = vmatpush.msra.mxu0 %v479
    %741 = vmatpush.msra.mxu0 %v478
    %742 = vmatpush.msra.mxu0 %v477
    %743 = vmatpush.msra.mxu0 %v476
    %744 = vmatpush.msra.mxu0 %v475
    %745 = vmatpush.msra.mxu0 %v474
    %746 = vmatpush.msra.mxu0 %v473
    %747 = vmatpush.msra.mxu0 %v472
    %748 = vmatpush.msra.mxu0 %v471
    %749 = vmatpush.msra.mxu0 %v470
    %750 = vmatmul.f32.gmra.mxu0 %v439
    %v751 = vpop.f32.mrf.mxu0
    %v752 = vadd.f32 %v732, %v751
    %753 = vdwg.mxu0
    %754 = vmatpush.msra.mxu0 %v501
    %755 = vmatpush.msra.mxu0 %v500
    %756 = vmatpush.msra.mxu0 %v499
    %757 = vmatpush.msra.mxu0 %v498
    %758 = vmatpush.msra.mxu0 %v497
    %759 = vmatpush.msra.mxu0 %v496
    %760 = vmatpush.msra.mxu0 %v495
    %761 = vmatpush.msra.mxu0 %v494
    %762 = vmatpush.msra.mxu0 %v493
    %763 = vmatpush.msra.mxu0 %v492
    %764 = vmatpush.msra.mxu0 %v491
    %765 = vmatpush.msra.mxu0 %v490
    %766 = vmatpush.msra.mxu0 %v489
    %767 = vmatpush.msra.mxu0 %v488
    %768 = vmatpush.msra.mxu0 %v487
    %769 = vmatpush.msra.mxu0 %v486
    %770 = vmatmul.f32.gmra.mxu0 %v440
    %v771 = vpop.f32.mrf.mxu0
    %v772 = vadd.f32 %v752, %v771
    %773 = vdwg.mxu0
    %774 = vmatpush.msra.mxu0 %v517
    %775 = vmatpush.msra.mxu0 %v516
    %776 = vmatpush.msra.mxu0 %v515
    %777 = vmatpush.msra.mxu0 %v514
    %778 = vmatpush.msra.mxu0 %v513
    %779 = vmatpush.msra.mxu0 %v512
    %780 = vmatpush.msra.mxu0 %v511
    %781 = vmatpush.msra.mxu0 %v510
    %782 = vmatpush.msra.mxu0 %v509
    %783 = vmatpush.msra.mxu0 %v508
    %784 = vmatpush.msra.mxu0 %v507
    %785 = vmatpush.msra.mxu0 %v506
    %786 = vmatpush.msra.mxu0 %v505
    %787 = vmatpush.msra.mxu0 %v504
    %788 = vmatpush.msra.mxu0 %v503
    %789 = vmatpush.msra.mxu0 %v502
    %790 = vmatmul.f32.gmra.mxu0 %v441
    %v791 = vpop.f32.mrf.mxu0
    %v792 = vadd.f32 %v772, %v791
    %793 = vdwg.mxu0
    %794 = vmatpush.msra.mxu0 %v533
    %795 = vmatpush.msra.mxu0 %v532
    %796 = vmatpush.msra.mxu0 %v531
    %797 = vmatpush.msra.mxu0 %v530
    %798 = vmatpush.msra.mxu0 %v529
    %799 = vmatpush.msra.mxu0 %v528
    %800 = vmatpush.msra.mxu0 %v527
    %801 = vmatpush.msra.mxu0 %v526
    %802 = vmatpush.msra.mxu0 %v525
    %803 = vmatpush.msra.mxu0 %v524
    %804 = vmatpush.msra.mxu0 %v523
    %805 = vmatpush.msra.mxu0 %v522
    %806 = vmatpush.msra.mxu0 %v521
    %807 = vmatpush.msra.mxu0 %v520
    %808 = vmatpush.msra.mxu0 %v519
    %809 = vmatpush.msra.mxu0 %v518
    %810 = vmatmul.f32.gmra.mxu0 %v442
    %v811 = vpop.f32.mrf.mxu0
    %v812 = vadd.f32 %v792, %v811
    %813 = vdwg.mxu0
    %814 = vmatpush.msra.mxu0 %v549
    %815 = vmatpush.msra.mxu0 %v548
    %816 = vmatpush.msra.mxu0 %v547
    %817 = vmatpush.msra.mxu0 %v546
    %818 = vmatpush.msra.mxu0 %v545
    %819 = vmatpush.msra.mxu0 %v544
    %820 = vmatpush.msra.mxu0 %v543
    %821 = vmatpush.msra.mxu0 %v542
    %822 = vmatpush.msra.mxu0 %v541
    %823 = vmatpush.msra.mxu0 %v540
    %824 = vmatpush.msra.mxu0 %v539
    %825 = vmatpush.msra.mxu0 %v538
    %826 = vmatpush.msra.mxu0 %v537
    %827 = vmatpush.msra.mxu0 %v536
    %828 = vmatpush.msra.mxu0 %v535
    %829 = vmatpush.msra.mxu0 %v534
    %830 = vmatmul.f32.gmra.mxu0 %v443
    %v831 = vpop.f32.mrf.mxu0
    %v832 = vadd.f32 %v812, %v831
    %833 = vdwg.mxu0
    %834 = vmatpush.msra.mxu0 %v565
    %835 = vmatpush.msra.mxu0 %v564
    %836 = vmatpush.msra.mxu0 %v563
    %837 = vmatpush.msra.mxu0 %v562
    %838 = vmatpush.msra.mxu0 %v561
    %839 = vmatpush.msra.mxu0 %v560
    %840 = vmatpush.msra.mxu0 %v559
    %841 = vmatpush.msra.mxu0 %v558
    %842 = vmatpush.msra.mxu0 %v557
    %843 = vmatpush.msra.mxu0 %v556
    %844 = vmatpush.msra.mxu0 %v555
    %845 = vmatpush.msra.mxu0 %v554
    %846 = vmatpush.msra.mxu0 %v553
    %847 = vmatpush.msra.mxu0 %v552
    %848 = vmatpush.msra.mxu0 %v551
    %849 = vmatpush.msra.mxu0 %v550
    %850 = vmatmul.f32.gmra.mxu0 %v444
    %v851 = vpop.f32.mrf.mxu0
    %v852 = vadd.f32 %v832, %v851
    %853 = vdwg.mxu0
    %854 = vmatpush.msra.mxu0 %v581
    %855 = vmatpush.msra.mxu0 %v580
    %856 = vmatpush.msra.mxu0 %v579
    %857 = vmatpush.msra.mxu0 %v578
    %858 = vmatpush.msra.mxu0 %v577
    %859 = vmatpush.msra.mxu0 %v576
    %860 = vmatpush.msra.mxu0 %v575
    %861 = vmatpush.msra.mxu0 %v574
    %862 = vmatpush.msra.mxu0 %v573
    %863 = vmatpush.msra.mxu0 %v572
    %864 = vmatpush.msra.mxu0 %v571
    %865 = vmatpush.msra.mxu0 %v570
    %866 = vmatpush.msra.mxu0 %v569
    %867 = vmatpush.msra.mxu0 %v568
    %868 = vmatpush.msra.mxu0 %v567
    %869 = vmatpush.msra.mxu0 %v566
    %870 = vmatmul.f32.gmra.mxu0 %v445
    %v871 = vpop.f32.mrf.mxu0
    %v872 = vadd.f32 %v852, %v871
    %873 = vdwg.mxu0
    %874 = vmatpush.msra.mxu0 %v597
    %875 = vmatpush.msra.mxu0 %v596
    %876 = vmatpush.msra.mxu0 %v595
    %877 = vmatpush.msra.mxu0 %v594
    %878 = vmatpush.msra.mxu0 %v593
    %879 = vmatpush.msra.mxu0 %v592
    %880 = vmatpush.msra.mxu0 %v591
    %881 = vmatpush.msra.mxu0 %v590
    %882 = vmatpush.msra.mxu0 %v589
    %883 = vmatpush.msra.mxu0 %v588
    %884 = vmatpush.msra.mxu0 %v587
    %885 = vmatpush.msra.mxu0 %v586
    %886 = vmatpush.msra.mxu0 %v585
    %887 = vmatpush.msra.mxu0 %v584
    %888 = vmatpush.msra.mxu0 %v583
    %889 = vmatpush.msra.mxu0 %v582
    %890 = vmatmul.f32.gmra.mxu0 %v446
    %v891 = vpop.f32.mrf.mxu0
    %v892 = vadd.f32 %v872, %v891
    %893 = vdwg.mxu0
    %894 = vmatpush.msra.mxu0 %v613
    %895 = vmatpush.msra.mxu0 %v612
    %896 = vmatpush.msra.mxu0 %v611
    %897 = vmatpush.msra.mxu0 %v610
    %898 = vmatpush.msra.mxu0 %v609
    %899 = vmatpush.msra.mxu0 %v608
    %900 = vmatpush.msra.mxu0 %v607
    %901 = vmatpush.msra.mxu0 %v606
    %902 = vmatpush.msra.mxu0 %v605
    %903 = vmatpush.msra.mxu0 %v604
    %904 = vmatpush.msra.mxu0 %v603
    %905 = vmatpush.msra.mxu0 %v602
    %906 = vmatpush.msra.mxu0 %v601
    %907 = vmatpush.msra.mxu0 %v600
    %908 = vmatpush.msra.mxu0 %v599
    %909 = vmatpush.msra.mxu0 %v598
    %910 = vmatmul.f32.gmra.mxu0 %v447
    %v911 = vpop.f32.mrf.mxu0
    %v912 = vadd.f32 %v892, %v911
    %913 = vdwg.mxu0
    %914 = vmatpush.msra.mxu0 %v629
    %915 = vmatpush.msra.mxu0 %v628
    %916 = vmatpush.msra.mxu0 %v627
    %917 = vmatpush.msra.mxu0 %v626
    %918 = vmatpush.msra.mxu0 %v625
    %919 = vmatpush.msra.mxu0 %v624
    %920 = vmatpush.msra.mxu0 %v623
    %921 = vmatpush.msra.mxu0 %v622
    %922 = vmatpush.msra.mxu0 %v621
    %923 = vmatpush.msra.mxu0 %v620
    %924 = vmatpush.msra.mxu0 %v619
    %925 = vmatpush.msra.mxu0 %v618
    %926 = vmatpush.msra.mxu0 %v617
    %927 = vmatpush.msra.mxu0 %v616
    %928 = vmatpush.msra.mxu0 %v615
    %929 = vmatpush.msra.mxu0 %v614
    %930 = vmatmul.f32.gmra.mxu0 %v448
    %v931 = vpop.f32.mrf.mxu0
    %v932 = vadd.f32 %v912, %v931
    %933 = vdwg.mxu0
    %934 = vmatpush.msra.mxu0 %v645
    %935 = vmatpush.msra.mxu0 %v644
    %936 = vmatpush.msra.mxu0 %v643
    %937 = vmatpush.msra.mxu0 %v642
    %938 = vmatpush.msra.mxu0 %v641
    %939 = vmatpush.msra.mxu0 %v640
    %940 = vmatpush.msra.mxu0 %v639
    %941 = vmatpush.msra.mxu0 %v638
    %942 = vmatpush.msra.mxu0 %v637
    %943 = vmatpush.msra.mxu0 %v636
    %944 = vmatpush.msra.mxu0 %v635
    %945 = vmatpush.msra.mxu0 %v634
    %946 = vmatpush.msra.mxu0 %v633
    %947 = vmatpush.msra.mxu0 %v632
    %948 = vmatpush.msra.mxu0 %v631
    %949 = vmatpush.msra.mxu0 %v630
    %950 = vmatmul.f32.gmra.mxu0 %v449
    %v951 = vpop.f32.mrf.mxu0
    %v952 = vadd.f32 %v932, %v951
    %953 = vdwg.mxu0
    %954 = vmatpush.msra.mxu0 %v661
    %955 = vmatpush.msra.mxu0 %v660
    %956 = vmatpush.msra.mxu0 %v659
    %957 = vmatpush.msra.mxu0 %v658
    %958 = vmatpush.msra.mxu0 %v657
    %959 = vmatpush.msra.mxu0 %v656
    %960 = vmatpush.msra.mxu0 %v655
    %961 = vmatpush.msra.mxu0 %v654
    %962 = vmatpush.msra.mxu0 %v653
    %963 = vmatpush.msra.mxu0 %v652
    %964 = vmatpush.msra.mxu0 %v651
    %965 = vmatpush.msra.mxu0 %v650
    %966 = vmatpush.msra.mxu0 %v649
    %967 = vmatpush.msra.mxu0 %v648
    %968 = vmatpush.msra.mxu0 %v647
    %969 = vmatpush.msra.mxu0 %v646
    %970 = vmatmul.f32.gmra.mxu0 %v450
    %v971 = vpop.f32.mrf.mxu0
    %v972 = vadd.f32 %v952, %v971
    %973 = vdwg.mxu0
    %974 = vmatpush.msra.mxu0 %v677
    %975 = vmatpush.msra.mxu0 %v676
    %976 = vmatpush.msra.mxu0 %v675
    %977 = vmatpush.msra.mxu0 %v674
    %978 = vmatpush.msra.mxu0 %v673
    %979 = vmatpush.msra.mxu0 %v672
    %980 = vmatpush.msra.mxu0 %v671
    %981 = vmatpush.msra.mxu0 %v670
    %982 = vmatpush.msra.mxu0 %v669
    %983 = vmatpush.msra.mxu0 %v668
    %984 = vmatpush.msra.mxu0 %v667
    %985 = vmatpush.msra.mxu0 %v666
    %986 = vmatpush.msra.mxu0 %v665
    %987 = vmatpush.msra.mxu0 %v664
    %988 = vmatpush.msra.mxu0 %v663
    %989 = vmatpush.msra.mxu0 %v662
    %990 = vmatmul.f32.gmra.mxu0 %v451
    %v991 = vpop.f32.mrf.mxu0
    %v992 = vadd.f32 %v972, %v991
    %993 = vdwg.mxu0
    %994 = vmatpush.msra.mxu0 %v693
    %995 = vmatpush.msra.mxu0 %v692
    %996 = vmatpush.msra.mxu0 %v691
    %997 = vmatpush.msra.mxu0 %v690
    %998 = vmatpush.msra.mxu0 %v689
    %999 = vmatpush.msra.mxu0 %v688
    %1000 = vmatpush.msra.mxu0 %v687
    %1001 = vmatpush.msra.mxu0 %v686
    %1002 = vmatpush.msra.mxu0 %v685
    %1003 = vmatpush.msra.mxu0 %v684
    %1004 = vmatpush.msra.mxu0 %v683
    %1005 = vmatpush.msra.mxu0 %v682
    %1006 = vmatpush.msra.mxu0 %v681
    %1007 = vmatpush.msra.mxu0 %v680
    %1008 = vmatpush.msra.mxu0 %v679
    %1009 = vmatpush.msra.mxu0 %v678
    %1010 = vmatmul.f32.gmra.mxu0 %v452
    %v1011 = vpop.f32.mrf.mxu0
    %v1012 = vadd.f32 %v992, %v1011
    %1013 = vdwg.mxu0
    %1014 = vmatpush.msra.mxu0 %v709
    %1015 = vmatpush.msra.mxu0 %v708
    %1016 = vmatpush.msra.mxu0 %v707
    %1017 = vmatpush.msra.mxu0 %v706
    %1018 = vmatpush.msra.mxu0 %v705
    %1019 = vmatpush.msra.mxu0 %v704
    %1020 = vmatpush.msra.mxu0 %v703
    %1021 = vmatpush.msra.mxu0 %v702
    %1022 = vmatpush.msra.mxu0 %v701
    %1023 = vmatpush.msra.mxu0 %v700
    %1024 = vmatpush.msra.mxu0 %v699
    %1025 = vmatpush.msra.mxu0 %v698
    %1026 = vmatpush.msra.mxu0 %v697
    %1027 = vmatpush.msra.mxu0 %v696
    %1028 = vmatpush.msra.mxu0 %v695
    %1029 = vmatpush.msra.mxu0 %v694
    %1030 = vmatmul.f32.gmra.mxu0 %v453
    %v1031 = vpop.f32.mrf.mxu0
    %v1032 = vadd.f32 %v1012, %v1031
    %1033 = vdwg.mxu0
    %1034 = vst [vmem:[#allocation10] sm:$0xff] %v1032
    // Predicated region
    $region30: #{tpu_custom_call.1} parent=1 // pred_check
      _
    $region31: #{tpu_custom_call.1} parent=1 // pred_check_branch
      %1036 = sbr.rel (0) target = $region33
    $region32: #{tpu_custom_call.1} parent=1 // pred_region
      %1038 = vsyncadd [#allocation5], 0
      %s1040 = sshll.u32 [#allocation10], 4
      %s1041 = int_to_ptr.vmem [resolvable:$true] %s1040
      %s1042 = sshll.u32 %s4, 4
      %s1043 = int_to_ptr.hbm [resolvable:$true] %s1042
      %1045 = dma.vmem_to_hbm [thread:$0]  %s1041, 128, %s1043, [#allocation5]
    $region33: #{tpu_custom_call.1} parent=1 // pred_fallthru
      _
    // Predicated region
    $region34: #{tpu_custom_call.1} parent=1 // pred_check
      _
    $region35: #{tpu_custom_call.1} parent=1 // pred_check_branch
      %1047 = sbr.rel (0) target = $region37
    $region36: #{tpu_custom_call.1} parent=1 // pred_region
      %1049 = dma.done [#allocation5], 128
    $region37: #{tpu_custom_call.1} parent=1 // pred_fallthru
      _
    %1050 = vsyncpa [#allocation4], 1
    %1051 = vsyncpa [#allocation9], 1
    %1052 = vsyncpa [#allocation5], 1
    %1053 = vsyncpa [#allocation6], 1

</llo_original>
